<compile_context>
chip_gen: v7x
topology: tpu7x:2x2x1
jax: 0.10.0
libtpu: 0.0.40
codegen_flags: <defaults>
</compile_context>

<pallas_src>
import functools

import jax
import jax.numpy as jnp
from jax import lax
from jax.experimental import pallas as pl
from jax.experimental.pallas import tpu as pltpu

LN_EPS = 1e-5  # matches nn.LayerNorm default


def _layernorm(x, gamma, beta):
    # x: (N, E), gamma/beta: (1, E); all f32
    mu = jnp.mean(x, axis=-1, keepdims=True)
    var = jnp.mean((x - mu) ** 2, axis=-1, keepdims=True)
    return (x - mu) * lax.rsqrt(var + LN_EPS) * gamma + beta


def fused_encoder_kernel(
    x_ref,
    ln1g_ref, ln1b_ref,
    wq_ref, bq_ref, wk_ref, bk_ref, wv_ref, bv_ref, wo_ref, bo_ref,
    ln2g_ref, ln2b_ref,
    w1_ref, b1_ref, w2_ref, b2_ref,
    o_ref,
    *, num_heads, head_dim, compute_dtype,
):
    layer = pl.program_id(1)

    # Layer 0: seed the resident activation slab from the input.
    @pl.when(layer == 0)
    def _():
        o_ref[...] = x_ref[...]

    x = o_ref[0]  # (N, E) f32 residual stream, resident in VMEM across layers

    def mx(a):
        # Cast MXU operands only; element-wise math stays f32 (v5e-safe).
        return a.astype(compute_dtype)

    # ---- norm1 -> multi-head self-attention -> residual ----
    xn1 = _layernorm(x, ln1g_ref[0], ln1b_ref[0])
    xn1_c = mx(xn1)

    # 1/sqrt(head_dim) is folded into Wq / bq host-side.
    q = jnp.dot(xn1_c, wq_ref[0], preferred_element_type=jnp.float32) + bq_ref[0]
    k = jnp.dot(xn1_c, wk_ref[0], preferred_element_type=jnp.float32) + bk_ref[0]
    v = jnp.dot(xn1_c, wv_ref[0], preferred_element_type=jnp.float32) + bv_ref[0]

    wo = wo_ref[0]                   # (E, E), compute dtype
    attn_out = jnp.zeros_like(x)     # (N, E) f32, lane-dense accumulator
    for h in range(num_heads):       # static unroll; per-head temporaries die each iter
        lo = h * head_dim
        hi = lo + head_dim
        qh = mx(q[:, lo:hi])         # (N, Dh)
        kh = mx(k[:, lo:hi])
        vh = mx(v[:, lo:hi])
        # scores: contract head_dim directly (no explicit kh.T transpose)
        s = lax.dot_general(qh, kh, (((1,), (1,)), ((), ())),
                            preferred_element_type=jnp.float32)        # (N, N)
        s = s - jnp.max(s, axis=-1, keepdims=True)
        p = jnp.exp(s)
        # softmax denominator on the EUP (approx reciprocal ~ free slot)
        p = p * pl.reciprocal(jnp.sum(p, axis=-1, keepdims=True), approx=True)
        ctx = jnp.dot(mx(p), vh, preferred_element_type=jnp.float32)   # (N, Dh)
        # Fold this head's slice of the output projection (replaces concatenate).
        attn_out = attn_out + jnp.dot(mx(ctx), wo[lo:hi, :],
                                      preferred_element_type=jnp.float32)

    x1 = x + attn_out + bo_ref[0]    # residual 1 (dropout = identity, eval mode)

    # ---- norm2 -> feed-forward -> residual ----
    xn2 = _layernorm(x1, ln2g_ref[0], ln2b_ref[0])
    h1 = jnp.dot(mx(xn2), w1_ref[0], preferred_element_type=jnp.float32) + b1_ref[0]
    h1 = jnp.maximum(h1, 0.0)        # ReLU
    ffn = jnp.dot(mx(h1), w2_ref[0], preferred_element_type=jnp.float32) + b2_ref[0]

    o_ref[0] = x1 + ffn              # residual 2; stays resident for the next layer


def transformer_encoder(x, layer_params, *, num_heads,
                        compute_dtype=jnp.float32,
                        vmem_limit_bytes=48 * 1024 * 1024):
    """Fused L-layer encoder forward.

    x: (B, N, E) float32.  layer_params: list of per-layer dicts (init_layer_params).
    compute_dtype: dtype fed to the MXU (use jnp.bfloat16 on v6e/v7x); accumulation
    and all element-wise math remain float32.
    """
    B, N, E = x.shape
    L = len(layer_params)
    hidden = layer_params[0]["w1"].shape[1]
    head_dim = E // num_heads
    scale = head_dim ** (-0.5)

    stack = lambda name: jnp.stack([p[name] for p in layer_params], axis=0)

    # Fold attention scale into the query projection; cast matmul weights to the
    # MXU dtype host-side (halves weight HBM/VMEM traffic for bf16). Biases and
    # LayerNorm params stay f32 (consumed by f32 VPU adds).
    wq = (stack("wq") * scale).astype(compute_dtype)
    bq = stack("bq") * scale
    wk = stack("wk").astype(compute_dtype)
    wv = stack("wv").astype(compute_dtype)
    wo = stack("wo").astype(compute_dtype)
    w1 = stack("w1").astype(compute_dtype)
    w2 = stack("w2").astype(compute_dtype)

    args = (
        x,
        stack("ln1_g"), stack("ln1_b"),
        wq, bq, wk, stack("bk"), wv, stack("bv"), wo, stack("bo"),
        stack("ln2_g"), stack("ln2_b"),
        w1, stack("b1"), w2, stack("b2"),
    )

    def wspec(*shape):  # per-layer block of a (L, ...) stacked parameter
        return pl.BlockSpec((1,) + shape, lambda b, l: (l, 0, 0))

    in_specs = [
        pl.BlockSpec((1, N, E), lambda b, l: (b, 0, 0)),   # x (read once per b)
        wspec(1, E), wspec(1, E),                          # ln1 gamma, beta
        wspec(E, E), wspec(1, E),                          # Wq (scale folded), bq
        wspec(E, E), wspec(1, E),                          # Wk, bk
        wspec(E, E), wspec(1, E),                          # Wv, bv
        wspec(E, E), wspec(1, E),                          # Wo, bo
        wspec(1, E), wspec(1, E),                          # ln2 gamma, beta
        wspec(E, hidden), wspec(1, hidden),                # W1, b1
        wspec(hidden, E), wspec(1, E),                     # W2, b2
    ]

    kernel = functools.partial(
        fused_encoder_kernel,
        num_heads=num_heads, head_dim=head_dim, compute_dtype=compute_dtype)

    return pl.pallas_call(
        kernel,
        out_shape=jax.ShapeDtypeStruct((B, N, E), jnp.float32),
        grid_spec=pltpu.PrefetchScalarGridSpec(
            num_scalar_prefetch=0,
            grid=(B, L),   # layer axis innermost & sequential: activations stay resident
            in_specs=in_specs,
            out_specs=pl.BlockSpec((1, N, E), lambda b, l: (b, 0, 0)),
        ),
        compiler_params=pltpu.CompilerParams(
            dimension_semantics=("parallel", "arbitrary"),
            vmem_limit_bytes=vmem_limit_bytes,
        ),
    )(*args)


def init_layer_params(key, embed_dim, hidden_dim):
    """Deterministic synthetic init. Linear weights stored pre-transposed: (in, out)."""
    ks = jax.random.split(key, 12)
    s = 0.05

    def lin(k, din, dout):
        kw, kb = jax.random.split(k)
        w = jax.random.normal(kw, (din, dout), jnp.float32) * s
        b = jax.random.normal(kb, (1, dout), jnp.float32) * s
        return w, b

    wq, bq = lin(ks[0], embed_dim, embed_dim)
    wk, bk = lin(ks[1], embed_dim, embed_dim)
    wv, bv = lin(ks[2], embed_dim, embed_dim)
    wo, bo = lin(ks[3], embed_dim, embed_dim)
    w1, b1 = lin(ks[4], embed_dim, hidden_dim)
    w2, b2 = lin(ks[5], hidden_dim, embed_dim)
    ln1_g = 1.0 + jax.random.normal(ks[6], (1, embed_dim), jnp.float32) * 0.01
    ln1_b = jax.random.normal(ks[7], (1, embed_dim), jnp.float32) * 0.01
    ln2_g = 1.0 + jax.random.normal(ks[8], (1, embed_dim), jnp.float32) * 0.01
    ln2_b = jax.random.normal(ks[9], (1, embed_dim), jnp.float32) * 0.01
    return dict(
        ln1_g=ln1_g, ln1_b=ln1_b,
        wq=wq, bq=bq, wk=wk, bk=bk, wv=wv, bv=bv, wo=wo, bo=bo,
        ln2_g=ln2_g, ln2_b=ln2_b,
        w1=w1, b1=b1, w2=w2, b2=b2,
    )


def reference_forward(x, layer_params, *, num_heads):
    """Pure-JAX reference matching the PyTorch module (eval mode)."""
    def ln(v, g, b):
        mu = jnp.mean(v, -1, keepdims=True)
        var = jnp.mean((v - mu) ** 2, -1, keepdims=True)
        return (v - mu) / jnp.sqrt(var + LN_EPS) * g + b

    B, N, E = x.shape
    Dh = E // num_heads
    for p in layer_params:
        xn = ln(x, p["ln1_g"], p["ln1_b"])
        q = xn @ p["wq"] + p["bq"]
        k = xn @ p["wk"] + p["bk"]
        v = xn @ p["wv"] + p["bv"]
        q = q.reshape(B, N, num_heads, Dh).transpose(0, 2, 1, 3) * (Dh ** -0.5)
        k = k.reshape(B, N, num_heads, Dh).transpose(0, 2, 1, 3)
        v = v.reshape(B, N, num_heads, Dh).transpose(0, 2, 1, 3)
        s = q @ k.transpose(0, 1, 3, 2)
        w = jax.nn.softmax(s, axis=-1)
        a = (w @ v).transpose(0, 2, 1, 3).reshape(B, N, E)
        a = a @ p["wo"] + p["bo"]
        x = x + a
        xn2 = ln(x, p["ln2_g"], p["ln2_b"])
        h = jnp.maximum(xn2 @ p["w1"] + p["b1"], 0.0)
        x = x + (h @ p["w2"] + p["b2"])
    return x


if __name__ == "__main__":
    B, N, E = 2, 8, 32
    NUM_HEADS = 4
    HIDDEN = 64
    NUM_LAYERS = 2

    key = jax.random.PRNGKey(0)
    kx, kp = jax.random.split(key)
    x = jax.random.normal(kx, (B, N, E), jnp.float32)

    layer_keys = jax.random.split(kp, NUM_LAYERS)
    layer_params = [init_layer_params(k, E, HIDDEN) for k in layer_keys]

    ref = reference_forward(x, layer_params, num_heads=NUM_HEADS)

    # f32 MXU path (exact apart from the EUP approximate softmax reciprocal).
    out = jax.block_until_ready(
        transformer_encoder(x, layer_params, num_heads=NUM_HEADS))
    assert out.shape == (B, N, E)
    assert jnp.allclose(out, ref, atol=1e-2, rtol=1e-2), \
        "f32 kernel mismatch vs pure-JAX reference"

    # bf16 MXU path (recommended on v6e / v7x; accumulation & element-wise stay f32).
    out_bf16 = jax.block_until_ready(
        transformer_encoder(x, layer_params, num_heads=NUM_HEADS,
                            compute_dtype=jnp.bfloat16))
    assert jnp.allclose(out_bf16, ref, atol=5e-2, rtol=5e-2), \
        "bf16 kernel mismatch vs pure-JAX reference"

    print("KERNEL_OK")
</pallas_src>

<mosaic_0001>
module attributes {stable_mosaic.version = 11 : i64} {
  func.func @fused_encoder_kernel(%arg0: i32, %arg1: i32, %arg2: memref<1x8x32xf32, #tpu.memory_space<vmem>>, %arg3: memref<1x1x32xf32, #tpu.memory_space<vmem>>, %arg4: memref<1x1x32xf32, #tpu.memory_space<vmem>>, %arg5: memref<1x32x32xf32, #tpu.memory_space<vmem>>, %arg6: memref<1x1x32xf32, #tpu.memory_space<vmem>>, %arg7: memref<1x32x32xf32, #tpu.memory_space<vmem>>, %arg8: memref<1x1x32xf32, #tpu.memory_space<vmem>>, %arg9: memref<1x32x32xf32, #tpu.memory_space<vmem>>, %arg10: memref<1x1x32xf32, #tpu.memory_space<vmem>>, %arg11: memref<1x32x32xf32, #tpu.memory_space<vmem>>, %arg12: memref<1x1x32xf32, #tpu.memory_space<vmem>>, %arg13: memref<1x1x32xf32, #tpu.memory_space<vmem>>, %arg14: memref<1x1x32xf32, #tpu.memory_space<vmem>>, %arg15: memref<1x32x64xf32, #tpu.memory_space<vmem>>, %arg16: memref<1x1x64xf32, #tpu.memory_space<vmem>>, %arg17: memref<1x64x32xf32, #tpu.memory_space<vmem>>, %arg18: memref<1x1x32xf32, #tpu.memory_space<vmem>>, %arg19: memref<1x8x32xf32, #tpu.memory_space<vmem>>) attributes {dimension_semantics = [#tpu.dimension_semantics<parallel>, #tpu.dimension_semantics<arbitrary>], iteration_bounds = array<i64: 2, 2>, scalar_prefetch = 0 : i64, scratch_operands = 0 : i64, tpu.core_type = #tpu.core_type<tc>, window_params = [{transform_indices = @transform_0, window_bounds = array<i64: 1, 8, 32>}, {transform_indices = @transform_1, window_bounds = array<i64: 1, 1, 32>}, {transform_indices = @transform_2, window_bounds = array<i64: 1, 1, 32>}, {transform_indices = @transform_3, window_bounds = array<i64: 1, 32, 32>}, {transform_indices = @transform_4, window_bounds = array<i64: 1, 1, 32>}, {transform_indices = @transform_5, window_bounds = array<i64: 1, 32, 32>}, {transform_indices = @transform_6, window_bounds = array<i64: 1, 1, 32>}, {transform_indices = @transform_7, window_bounds = array<i64: 1, 32, 32>}, {transform_indices = @transform_8, window_bounds = array<i64: 1, 1, 32>}, {transform_indices = @transform_9, window_bounds = array<i64: 1, 32, 32>}, {transform_indices = @transform_10, window_bounds = array<i64: 1, 1, 32>}, {transform_indices = @transform_11, window_bounds = array<i64: 1, 1, 32>}, {transform_indices = @transform_12, window_bounds = array<i64: 1, 1, 32>}, {transform_indices = @transform_13, window_bounds = array<i64: 1, 32, 64>}, {transform_indices = @transform_14, window_bounds = array<i64: 1, 1, 64>}, {transform_indices = @transform_15, window_bounds = array<i64: 1, 64, 32>}, {transform_indices = @transform_16, window_bounds = array<i64: 1, 1, 32>}, {transform_indices = @transform_17, window_bounds = array<i64: 1, 8, 32>}]} {
    %c0_i32 = arith.constant 0 : i32
    %0 = arith.cmpi eq, %arg1, %c0_i32 : i32
    %1 = arith.extui %0 : i1 to i32
    %c0_i32_0 = arith.constant 0 : i32
    %2 = arith.cmpi ne, %1, %c0_i32_0 : i32
    scf.if %2 {
      %c0_90 = arith.constant 0 : index
      %c0_91 = arith.constant 0 : index
      %c0_92 = arith.constant 0 : index
      %178 = vector.load %arg2[%c0_90, %c0_91, %c0_92] : memref<1x8x32xf32, #tpu.memory_space<vmem>>, vector<1x8x32xf32>
      %c0_93 = arith.constant 0 : index
      %c0_94 = arith.constant 0 : index
      %c0_95 = arith.constant 0 : index
      %179 = vector.load %arg19[%c0_93, %c0_94, %c0_95] : memref<1x8x32xf32, #tpu.memory_space<vmem>>, vector<1x8x32xf32>
      tpu.vector_store %arg19[%c0_93, %c0_94, %c0_95], %178 {strides = array<i32>} : memref<1x8x32xf32, #tpu.memory_space<vmem>>, vector<1x8x32xf32>,
    } else {
    }
    %c0 = arith.constant 0 : index
    %c0_1 = arith.constant 0 : index
    %c0_2 = arith.constant 0 : index
    %3 = vector.load %arg19[%c0, %c0_1, %c0_2] : memref<1x8x32xf32, #tpu.memory_space<vmem>>, vector<1x8x32xf32>
    %4 = vector.shape_cast %3 : vector<1x8x32xf32> to vector<8x32xf32>
    %c0_3 = arith.constant 0 : index
    %c0_4 = arith.constant 0 : index
    %c0_5 = arith.constant 0 : index
    %5 = vector.load %arg3[%c0_3, %c0_4, %c0_5] : memref<1x1x32xf32, #tpu.memory_space<vmem>>, vector<1x1x32xf32>
    %6 = vector.shape_cast %5 : vector<1x1x32xf32> to vector<1x32xf32>
    %c0_6 = arith.constant 0 : index
    %c0_7 = arith.constant 0 : index
    %c0_8 = arith.constant 0 : index
    %7 = vector.load %arg4[%c0_6, %c0_7, %c0_8] : memref<1x1x32xf32, #tpu.memory_space<vmem>>, vector<1x1x32xf32>
    %8 = vector.shape_cast %7 : vector<1x1x32xf32> to vector<1x32xf32>
    %cst = arith.constant dense<0.000000e+00> : vector<8xf32>
    %9 = vector.multi_reduction <add>, %4, %cst [1] : vector<8x32xf32> to vector<8xf32>
    %10 = vector.shape_cast %9 : vector<8xf32> to vector<8x1xf32>
    %cst_9 = arith.constant 3.200000e+01 : f32
    %11 = vector.broadcast %cst_9 : f32 to vector<8x1xf32>
    %12 = arith.divf %10, %11 : vector<8x1xf32>
    %13 = vector.broadcast %12 : vector<8x1xf32> to vector<8x32xf32>
    %14 = arith.subf %4, %13 : vector<8x32xf32>
    %15 = arith.mulf %14, %14 : vector<8x32xf32>
    %cst_10 = arith.constant dense<0.000000e+00> : vector<8xf32>
    %16 = vector.multi_reduction <add>, %15, %cst_10 [1] : vector<8x32xf32> to vector<8xf32>
    %17 = vector.shape_cast %16 : vector<8xf32> to vector<8x1xf32>
    %cst_11 = arith.constant 3.200000e+01 : f32
    %18 = vector.broadcast %cst_11 : f32 to vector<8x1xf32>
    %19 = arith.divf %17, %18 : vector<8x1xf32>
    %20 = vector.broadcast %12 : vector<8x1xf32> to vector<8x32xf32>
    %21 = arith.subf %4, %20 : vector<8x32xf32>
    %cst_12 = arith.constant 9.99999974E-6 : f32
    %22 = vector.broadcast %cst_12 : f32 to vector<8x1xf32>
    %23 = arith.addf %19, %22 : vector<8x1xf32>
    %24 = math.rsqrt %23 : vector<8x1xf32>
    %25 = vector.broadcast %24 : vector<8x1xf32> to vector<8x32xf32>
    %26 = arith.mulf %21, %25 : vector<8x32xf32>
    %27 = vector.broadcast %6 : vector<1x32xf32> to vector<8x32xf32>
    %28 = arith.mulf %26, %27 : vector<8x32xf32>
    %29 = vector.broadcast %8 : vector<1x32xf32> to vector<8x32xf32>
    %30 = arith.addf %28, %29 : vector<8x32xf32>
    %c0_13 = arith.constant 0 : index
    %c0_14 = arith.constant 0 : index
    %c0_15 = arith.constant 0 : index
    %31 = vector.load %arg5[%c0_13, %c0_14, %c0_15] : memref<1x32x32xf32, #tpu.memory_space<vmem>>, vector<1x32x32xf32>
    %32 = vector.shape_cast %31 : vector<1x32x32xf32> to vector<32x32xf32>
    %cst_16 = arith.constant dense<0.000000e+00> : vector<8x32xf32>
    %33 = tpu.matmul %30, %32, %cst_16 {dimension_numbers = #tpu.dot_dimension_numbers<[1], [0], [0], [1], [0, 0, 1, 1], [], []>} : vector<8x32xf32>, vector<32x32xf32>, vector<8x32xf32> -> vector<8x32xf32>
    %c0_17 = arith.constant 0 : index
    %c0_18 = arith.constant 0 : index
    %c0_19 = arith.constant 0 : index
    %34 = vector.load %arg6[%c0_17, %c0_18, %c0_19] : memref<1x1x32xf32, #tpu.memory_space<vmem>>, vector<1x1x32xf32>
    %35 = vector.shape_cast %34 : vector<1x1x32xf32> to vector<1x32xf32>
    %36 = vector.broadcast %35 : vector<1x32xf32> to vector<8x32xf32>
    %37 = arith.addf %33, %36 : vector<8x32xf32>
    %c0_20 = arith.constant 0 : index
    %c0_21 = arith.constant 0 : index
    %c0_22 = arith.constant 0 : index
    %38 = vector.load %arg7[%c0_20, %c0_21, %c0_22] : memref<1x32x32xf32, #tpu.memory_space<vmem>>, vector<1x32x32xf32>
    %39 = vector.shape_cast %38 : vector<1x32x32xf32> to vector<32x32xf32>
    %cst_23 = arith.constant dense<0.000000e+00> : vector<8x32xf32>
    %40 = tpu.matmul %30, %39, %cst_23 {dimension_numbers = #tpu.dot_dimension_numbers<[1], [0], [0], [1], [0, 0, 1, 1], [], []>} : vector<8x32xf32>, vector<32x32xf32>, vector<8x32xf32> -> vector<8x32xf32>
    %c0_24 = arith.constant 0 : index
    %c0_25 = arith.constant 0 : index
    %c0_26 = arith.constant 0 : index
    %41 = vector.load %arg8[%c0_24, %c0_25, %c0_26] : memref<1x1x32xf32, #tpu.memory_space<vmem>>, vector<1x1x32xf32>
    %42 = vector.shape_cast %41 : vector<1x1x32xf32> to vector<1x32xf32>
    %43 = vector.broadcast %42 : vector<1x32xf32> to vector<8x32xf32>
    %44 = arith.addf %40, %43 : vector<8x32xf32>
    %c0_27 = arith.constant 0 : index
    %c0_28 = arith.constant 0 : index
    %c0_29 = arith.constant 0 : index
    %45 = vector.load %arg9[%c0_27, %c0_28, %c0_29] : memref<1x32x32xf32, #tpu.memory_space<vmem>>, vector<1x32x32xf32>
    %46 = vector.shape_cast %45 : vector<1x32x32xf32> to vector<32x32xf32>
    %cst_30 = arith.constant dense<0.000000e+00> : vector<8x32xf32>
    %47 = tpu.matmul %30, %46, %cst_30 {dimension_numbers = #tpu.dot_dimension_numbers<[1], [0], [0], [1], [0, 0, 1, 1], [], []>} : vector<8x32xf32>, vector<32x32xf32>, vector<8x32xf32> -> vector<8x32xf32>
    %c0_31 = arith.constant 0 : index
    %c0_32 = arith.constant 0 : index
    %c0_33 = arith.constant 0 : index
    %48 = vector.load %arg10[%c0_31, %c0_32, %c0_33] : memref<1x1x32xf32, #tpu.memory_space<vmem>>, vector<1x1x32xf32>
    %49 = vector.shape_cast %48 : vector<1x1x32xf32> to vector<1x32xf32>
    %50 = vector.broadcast %49 : vector<1x32xf32> to vector<8x32xf32>
    %51 = arith.addf %47, %50 : vector<8x32xf32>
    %c0_34 = arith.constant 0 : index
    %c0_35 = arith.constant 0 : index
    %c0_36 = arith.constant 0 : index
    %52 = vector.load %arg11[%c0_34, %c0_35, %c0_36] : memref<1x32x32xf32, #tpu.memory_space<vmem>>, vector<1x32x32xf32>
    %53 = vector.shape_cast %52 : vector<1x32x32xf32> to vector<32x32xf32>
    %cst_37 = arith.constant 0.000000e+00 : f32
    %54 = vector.broadcast %cst_37 : f32 to vector<8x32xf32>
    %55 = vector.extract_strided_slice %37 {offsets = [0, 0], sizes = [8, 8], strides = [1, 1]} : vector<8x32xf32> to vector<8x8xf32>
    %56 = vector.extract_strided_slice %44 {offsets = [0, 0], sizes = [8, 8], strides = [1, 1]} : vector<8x32xf32> to vector<8x8xf32>
    %57 = vector.extract_strided_slice %51 {offsets = [0, 0], sizes = [8, 8], strides = [1, 1]} : vector<8x32xf32> to vector<8x8xf32>
    %cst_38 = arith.constant dense<0.000000e+00> : vector<8x8xf32>
    %58 = tpu.matmul %55, %56, %cst_38 {dimension_numbers = #tpu.dot_dimension_numbers<[1], [1], [0], [0], [0, 0, 1, 0], [], []>} : vector<8x8xf32>, vector<8x8xf32>, vector<8x8xf32> -> vector<8x8xf32>
    %cst_39 = arith.constant dense<0xFF800000> : vector<8xf32>
    %59 = vector.multi_reduction <maximumf>, %58, %cst_39 [1] : vector<8x8xf32> to vector<8xf32>
    %60 = vector.shape_cast %59 : vector<8xf32> to vector<8x1xf32>
    %61 = vector.broadcast %60 : vector<8x1xf32> to vector<8x8xf32>
    %62 = arith.subf %58, %61 : vector<8x8xf32>
    %63 = math.exp %62 : vector<8x8xf32>
    %cst_40 = arith.constant dense<0.000000e+00> : vector<8xf32>
    %64 = vector.multi_reduction <add>, %63, %cst_40 [1] : vector<8x8xf32> to vector<8xf32>
    %65 = vector.shape_cast %64 : vector<8xf32> to vector<8x1xf32>
    %66 = tpu.reciprocal %65 {approx = true} : vector<8x1xf32> -> vector<8x1xf32>
    %67 = vector.broadcast %66 : vector<8x1xf32> to vector<8x8xf32>
    %68 = arith.mulf %63, %67 : vector<8x8xf32>
    %cst_41 = arith.constant dense<0.000000e+00> : vector<8x8xf32>
    %69 = tpu.matmul %68, %57, %cst_41 {dimension_numbers = #tpu.dot_dimension_numbers<[1], [0], [0], [1], [0, 0, 1, 1], [], []>} : vector<8x8xf32>, vector<8x8xf32>, vector<8x8xf32> -> vector<8x8xf32>
    %70 = vector.extract_strided_slice %53 {offsets = [0, 0], sizes = [8, 32], strides = [1, 1]} : vector<32x32xf32> to vector<8x32xf32>
    %cst_42 = arith.constant dense<0.000000e+00> : vector<8x32xf32>
    %71 = tpu.matmul %69, %70, %cst_42 {dimension_numbers = #tpu.dot_dimension_numbers<[1], [0], [0], [1], [0, 0, 1, 1], [], []>} : vector<8x8xf32>, vector<8x32xf32>, vector<8x32xf32> -> vector<8x32xf32>
    %72 = arith.addf %54, %71 : vector<8x32xf32>
    %73 = vector.extract_strided_slice %37 {offsets = [0, 8], sizes = [8, 8], strides = [1, 1]} : vector<8x32xf32> to vector<8x8xf32>
    %74 = vector.extract_strided_slice %44 {offsets = [0, 8], sizes = [8, 8], strides = [1, 1]} : vector<8x32xf32> to vector<8x8xf32>
    %75 = vector.extract_strided_slice %51 {offsets = [0, 8], sizes = [8, 8], strides = [1, 1]} : vector<8x32xf32> to vector<8x8xf32>
    %cst_43 = arith.constant dense<0.000000e+00> : vector<8x8xf32>
    %76 = tpu.matmul %73, %74, %cst_43 {dimension_numbers = #tpu.dot_dimension_numbers<[1], [1], [0], [0], [0, 0, 1, 0], [], []>} : vector<8x8xf32>, vector<8x8xf32>, vector<8x8xf32> -> vector<8x8xf32>
    %cst_44 = arith.constant dense<0xFF800000> : vector<8xf32>
    %77 = vector.multi_reduction <maximumf>, %76, %cst_44 [1] : vector<8x8xf32> to vector<8xf32>
    %78 = vector.shape_cast %77 : vector<8xf32> to vector<8x1xf32>
    %79 = vector.broadcast %78 : vector<8x1xf32> to vector<8x8xf32>
    %80 = arith.subf %76, %79 : vector<8x8xf32>
    %81 = math.exp %80 : vector<8x8xf32>
    %cst_45 = arith.constant dense<0.000000e+00> : vector<8xf32>
    %82 = vector.multi_reduction <add>, %81, %cst_45 [1] : vector<8x8xf32> to vector<8xf32>
    %83 = vector.shape_cast %82 : vector<8xf32> to vector<8x1xf32>
    %84 = tpu.reciprocal %83 {approx = true} : vector<8x1xf32> -> vector<8x1xf32>
    %85 = vector.broadcast %84 : vector<8x1xf32> to vector<8x8xf32>
    %86 = arith.mulf %81, %85 : vector<8x8xf32>
    %cst_46 = arith.constant dense<0.000000e+00> : vector<8x8xf32>
    %87 = tpu.matmul %86, %75, %cst_46 {dimension_numbers = #tpu.dot_dimension_numbers<[1], [0], [0], [1], [0, 0, 1, 1], [], []>} : vector<8x8xf32>, vector<8x8xf32>, vector<8x8xf32> -> vector<8x8xf32>
    %88 = vector.extract_strided_slice %53 {offsets = [8, 0], sizes = [8, 32], strides = [1, 1]} : vector<32x32xf32> to vector<8x32xf32>
    %cst_47 = arith.constant dense<0.000000e+00> : vector<8x32xf32>
    %89 = tpu.matmul %87, %88, %cst_47 {dimension_numbers = #tpu.dot_dimension_numbers<[1], [0], [0], [1], [0, 0, 1, 1], [], []>} : vector<8x8xf32>, vector<8x32xf32>, vector<8x32xf32> -> vector<8x32xf32>
    %90 = arith.addf %72, %89 : vector<8x32xf32>
    %91 = vector.extract_strided_slice %37 {offsets = [0, 16], sizes = [8, 8], strides = [1, 1]} : vector<8x32xf32> to vector<8x8xf32>
    %92 = vector.extract_strided_slice %44 {offsets = [0, 16], sizes = [8, 8], strides = [1, 1]} : vector<8x32xf32> to vector<8x8xf32>
    %93 = vector.extract_strided_slice %51 {offsets = [0, 16], sizes = [8, 8], strides = [1, 1]} : vector<8x32xf32> to vector<8x8xf32>
    %cst_48 = arith.constant dense<0.000000e+00> : vector<8x8xf32>
    %94 = tpu.matmul %91, %92, %cst_48 {dimension_numbers = #tpu.dot_dimension_numbers<[1], [1], [0], [0], [0, 0, 1, 0], [], []>} : vector<8x8xf32>, vector<8x8xf32>, vector<8x8xf32> -> vector<8x8xf32>
    %cst_49 = arith.constant dense<0xFF800000> : vector<8xf32>
    %95 = vector.multi_reduction <maximumf>, %94, %cst_49 [1] : vector<8x8xf32> to vector<8xf32>
    %96 = vector.shape_cast %95 : vector<8xf32> to vector<8x1xf32>
    %97 = vector.broadcast %96 : vector<8x1xf32> to vector<8x8xf32>
    %98 = arith.subf %94, %97 : vector<8x8xf32>
    %99 = math.exp %98 : vector<8x8xf32>
    %cst_50 = arith.constant dense<0.000000e+00> : vector<8xf32>
    %100 = vector.multi_reduction <add>, %99, %cst_50 [1] : vector<8x8xf32> to vector<8xf32>
    %101 = vector.shape_cast %100 : vector<8xf32> to vector<8x1xf32>
    %102 = tpu.reciprocal %101 {approx = true} : vector<8x1xf32> -> vector<8x1xf32>
    %103 = vector.broadcast %102 : vector<8x1xf32> to vector<8x8xf32>
    %104 = arith.mulf %99, %103 : vector<8x8xf32>
    %cst_51 = arith.constant dense<0.000000e+00> : vector<8x8xf32>
    %105 = tpu.matmul %104, %93, %cst_51 {dimension_numbers = #tpu.dot_dimension_numbers<[1], [0], [0], [1], [0, 0, 1, 1], [], []>} : vector<8x8xf32>, vector<8x8xf32>, vector<8x8xf32> -> vector<8x8xf32>
    %106 = vector.extract_strided_slice %53 {offsets = [16, 0], sizes = [8, 32], strides = [1, 1]} : vector<32x32xf32> to vector<8x32xf32>
    %cst_52 = arith.constant dense<0.000000e+00> : vector<8x32xf32>
    %107 = tpu.matmul %105, %106, %cst_52 {dimension_numbers = #tpu.dot_dimension_numbers<[1], [0], [0], [1], [0, 0, 1, 1], [], []>} : vector<8x8xf32>, vector<8x32xf32>, vector<8x32xf32> -> vector<8x32xf32>
    %108 = arith.addf %90, %107 : vector<8x32xf32>
    %109 = vector.extract_strided_slice %37 {offsets = [0, 24], sizes = [8, 8], strides = [1, 1]} : vector<8x32xf32> to vector<8x8xf32>
    %110 = vector.extract_strided_slice %44 {offsets = [0, 24], sizes = [8, 8], strides = [1, 1]} : vector<8x32xf32> to vector<8x8xf32>
    %111 = vector.extract_strided_slice %51 {offsets = [0, 24], sizes = [8, 8], strides = [1, 1]} : vector<8x32xf32> to vector<8x8xf32>
    %cst_53 = arith.constant dense<0.000000e+00> : vector<8x8xf32>
    %112 = tpu.matmul %109, %110, %cst_53 {dimension_numbers = #tpu.dot_dimension_numbers<[1], [1], [0], [0], [0, 0, 1, 0], [], []>} : vector<8x8xf32>, vector<8x8xf32>, vector<8x8xf32> -> vector<8x8xf32>
    %cst_54 = arith.constant dense<0xFF800000> : vector<8xf32>
    %113 = vector.multi_reduction <maximumf>, %112, %cst_54 [1] : vector<8x8xf32> to vector<8xf32>
    %114 = vector.shape_cast %113 : vector<8xf32> to vector<8x1xf32>
    %115 = vector.broadcast %114 : vector<8x1xf32> to vector<8x8xf32>
    %116 = arith.subf %112, %115 : vector<8x8xf32>
    %117 = math.exp %116 : vector<8x8xf32>
    %cst_55 = arith.constant dense<0.000000e+00> : vector<8xf32>
    %118 = vector.multi_reduction <add>, %117, %cst_55 [1] : vector<8x8xf32> to vector<8xf32>
    %119 = vector.shape_cast %118 : vector<8xf32> to vector<8x1xf32>
    %120 = tpu.reciprocal %119 {approx = true} : vector<8x1xf32> -> vector<8x1xf32>
    %121 = vector.broadcast %120 : vector<8x1xf32> to vector<8x8xf32>
    %122 = arith.mulf %117, %121 : vector<8x8xf32>
    %cst_56 = arith.constant dense<0.000000e+00> : vector<8x8xf32>
    %123 = tpu.matmul %122, %111, %cst_56 {dimension_numbers = #tpu.dot_dimension_numbers<[1], [0], [0], [1], [0, 0, 1, 1], [], []>} : vector<8x8xf32>, vector<8x8xf32>, vector<8x8xf32> -> vector<8x8xf32>
    %124 = vector.extract_strided_slice %53 {offsets = [24, 0], sizes = [8, 32], strides = [1, 1]} : vector<32x32xf32> to vector<8x32xf32>
    %cst_57 = arith.constant dense<0.000000e+00> : vector<8x32xf32>
    %125 = tpu.matmul %123, %124, %cst_57 {dimension_numbers = #tpu.dot_dimension_numbers<[1], [0], [0], [1], [0, 0, 1, 1], [], []>} : vector<8x8xf32>, vector<8x32xf32>, vector<8x32xf32> -> vector<8x32xf32>
    %126 = arith.addf %108, %125 : vector<8x32xf32>
    %127 = arith.addf %4, %126 : vector<8x32xf32>
    %c0_58 = arith.constant 0 : index
    %c0_59 = arith.constant 0 : index
    %c0_60 = arith.constant 0 : index
    %128 = vector.load %arg12[%c0_58, %c0_59, %c0_60] : memref<1x1x32xf32, #tpu.memory_space<vmem>>, vector<1x1x32xf32>
    %129 = vector.shape_cast %128 : vector<1x1x32xf32> to vector<1x32xf32>
    %130 = vector.broadcast %129 : vector<1x32xf32> to vector<8x32xf32>
    %131 = arith.addf %127, %130 : vector<8x32xf32>
    %c0_61 = arith.constant 0 : index
    %c0_62 = arith.constant 0 : index
    %c0_63 = arith.constant 0 : index
    %132 = vector.load %arg13[%c0_61, %c0_62, %c0_63] : memref<1x1x32xf32, #tpu.memory_space<vmem>>, vector<1x1x32xf32>
    %133 = vector.shape_cast %132 : vector<1x1x32xf32> to vector<1x32xf32>
    %c0_64 = arith.constant 0 : index
    %c0_65 = arith.constant 0 : index
    %c0_66 = arith.constant 0 : index
    %134 = vector.load %arg14[%c0_64, %c0_65, %c0_66] : memref<1x1x32xf32, #tpu.memory_space<vmem>>, vector<1x1x32xf32>
    %135 = vector.shape_cast %134 : vector<1x1x32xf32> to vector<1x32xf32>
    %cst_67 = arith.constant dense<0.000000e+00> : vector<8xf32>
    %136 = vector.multi_reduction <add>, %131, %cst_67 [1] : vector<8x32xf32> to vector<8xf32>
    %137 = vector.shape_cast %136 : vector<8xf32> to vector<8x1xf32>
    %cst_68 = arith.constant 3.200000e+01 : f32
    %138 = vector.broadcast %cst_68 : f32 to vector<8x1xf32>
    %139 = arith.divf %137, %138 : vector<8x1xf32>
    %140 = vector.broadcast %139 : vector<8x1xf32> to vector<8x32xf32>
    %141 = arith.subf %131, %140 : vector<8x32xf32>
    %142 = arith.mulf %141, %141 : vector<8x32xf32>
    %cst_69 = arith.constant dense<0.000000e+00> : vector<8xf32>
    %143 = vector.multi_reduction <add>, %142, %cst_69 [1] : vector<8x32xf32> to vector<8xf32>
    %144 = vector.shape_cast %143 : vector<8xf32> to vector<8x1xf32>
    %cst_70 = arith.constant 3.200000e+01 : f32
    %145 = vector.broadcast %cst_70 : f32 to vector<8x1xf32>
    %146 = arith.divf %144, %145 : vector<8x1xf32>
    %147 = vector.broadcast %139 : vector<8x1xf32> to vector<8x32xf32>
    %148 = arith.subf %131, %147 : vector<8x32xf32>
    %cst_71 = arith.constant 9.99999974E-6 : f32
    %149 = vector.broadcast %cst_71 : f32 to vector<8x1xf32>
    %150 = arith.addf %146, %149 : vector<8x1xf32>
    %151 = math.rsqrt %150 : vector<8x1xf32>
    %152 = vector.broadcast %151 : vector<8x1xf32> to vector<8x32xf32>
    %153 = arith.mulf %148, %152 : vector<8x32xf32>
    %154 = vector.broadcast %133 : vector<1x32xf32> to vector<8x32xf32>
    %155 = arith.mulf %153, %154 : vector<8x32xf32>
    %156 = vector.broadcast %135 : vector<1x32xf32> to vector<8x32xf32>
    %157 = arith.addf %155, %156 : vector<8x32xf32>
    %c0_72 = arith.constant 0 : index
    %c0_73 = arith.constant 0 : index
    %c0_74 = arith.constant 0 : index
    %158 = vector.load %arg15[%c0_72, %c0_73, %c0_74] : memref<1x32x64xf32, #tpu.memory_space<vmem>>, vector<1x32x64xf32>
    %159 = vector.shape_cast %158 : vector<1x32x64xf32> to vector<32x64xf32>
    %cst_75 = arith.constant dense<0.000000e+00> : vector<8x64xf32>
    %160 = tpu.matmul %157, %159, %cst_75 {dimension_numbers = #tpu.dot_dimension_numbers<[1], [0], [0], [1], [0, 0, 1, 1], [], []>} : vector<8x32xf32>, vector<32x64xf32>, vector<8x64xf32> -> vector<8x64xf32>
    %c0_76 = arith.constant 0 : index
    %c0_77 = arith.constant 0 : index
    %c0_78 = arith.constant 0 : index
    %161 = vector.load %arg16[%c0_76, %c0_77, %c0_78] : memref<1x1x64xf32, #tpu.memory_space<vmem>>, vector<1x1x64xf32>
    %162 = vector.shape_cast %161 : vector<1x1x64xf32> to vector<1x64xf32>
    %163 = vector.broadcast %162 : vector<1x64xf32> to vector<8x64xf32>
    %164 = arith.addf %160, %163 : vector<8x64xf32>
    %cst_79 = arith.constant 0.000000e+00 : f32
    %165 = vector.broadcast %cst_79 : f32 to vector<8x64xf32>
    %166 = arith.maximumf %164, %165 : vector<8x64xf32>
    %c0_80 = arith.constant 0 : index
    %c0_81 = arith.constant 0 : index
    %c0_82 = arith.constant 0 : index
    %167 = vector.load %arg17[%c0_80, %c0_81, %c0_82] : memref<1x64x32xf32, #tpu.memory_space<vmem>>, vector<1x64x32xf32>
    %168 = vector.shape_cast %167 : vector<1x64x32xf32> to vector<64x32xf32>
    %cst_83 = arith.constant dense<0.000000e+00> : vector<8x32xf32>
    %169 = tpu.matmul %166, %168, %cst_83 {dimension_numbers = #tpu.dot_dimension_numbers<[1], [0], [0], [1], [0, 0, 1, 1], [], []>} : vector<8x64xf32>, vector<64x32xf32>, vector<8x32xf32> -> vector<8x32xf32>
    %c0_84 = arith.constant 0 : index
    %c0_85 = arith.constant 0 : index
    %c0_86 = arith.constant 0 : index
    %170 = vector.load %arg18[%c0_84, %c0_85, %c0_86] : memref<1x1x32xf32, #tpu.memory_space<vmem>>, vector<1x1x32xf32>
    %171 = vector.shape_cast %170 : vector<1x1x32xf32> to vector<1x32xf32>
    %172 = vector.broadcast %171 : vector<1x32xf32> to vector<8x32xf32>
    %173 = arith.addf %169, %172 : vector<8x32xf32>
    %174 = arith.addf %131, %173 : vector<8x32xf32>
    %c0_87 = arith.constant 0 : index
    %c0_88 = arith.constant 0 : index
    %c0_89 = arith.constant 0 : index
    %175 = vector.load %arg19[%c0_87, %c0_88, %c0_89] : memref<1x8x32xf32, #tpu.memory_space<vmem>>, vector<1x8x32xf32>
    %176 = vector.shape_cast %175 : vector<1x8x32xf32> to vector<8x32xf32>
    %177 = vector.shape_cast %174 : vector<8x32xf32> to vector<1x8x32xf32>
    tpu.vector_store %arg19[%c0_87, %c0_88, %c0_89], %177 {strides = array<i32>} : memref<1x8x32xf32, #tpu.memory_space<vmem>>, vector<1x8x32xf32>,
    return
  }
  func.func @transform_0(%arg0: i32, %arg1: i32) -> (i32, i32, i32) {
    %c0_i32 = arith.constant 0 : i32
    %c0_i32_0 = arith.constant 0 : i32
    %c0_i32_1 = arith.constant 0 : i32
    return %arg0, %c0_i32, %c0_i32_0 : i32, i32, i32
  }
  func.func @transform_1(%arg0: i32, %arg1: i32) -> (i32, i32, i32) {
    %c0_i32 = arith.constant 0 : i32
    %c0_i32_0 = arith.constant 0 : i32
    %c0_i32_1 = arith.constant 0 : i32
    return %arg1, %c0_i32, %c0_i32_0 : i32, i32, i32
  }
  func.func @transform_2(%arg0: i32, %arg1: i32) -> (i32, i32, i32) {
    %c0_i32 = arith.constant 0 : i32
    %c0_i32_0 = arith.constant 0 : i32
    %c0_i32_1 = arith.constant 0 : i32
    return %arg1, %c0_i32, %c0_i32_0 : i32, i32, i32
  }
  func.func @transform_3(%arg0: i32, %arg1: i32) -> (i32, i32, i32) {
    %c0_i32 = arith.constant 0 : i32
    %c0_i32_0 = arith.constant 0 : i32
    %c0_i32_1 = arith.constant 0 : i32
    return %arg1, %c0_i32, %c0_i32_0 : i32, i32, i32
  }
  func.func @transform_4(%arg0: i32, %arg1: i32) -> (i32, i32, i32) {
    %c0_i32 = arith.constant 0 : i32
    %c0_i32_0 = arith.constant 0 : i32
    %c0_i32_1 = arith.constant 0 : i32
    return %arg1, %c0_i32, %c0_i32_0 : i32, i32, i32
  }
  func.func @transform_5(%arg0: i32, %arg1: i32) -> (i32, i32, i32) {
    %c0_i32 = arith.constant 0 : i32
    %c0_i32_0 = arith.constant 0 : i32
    %c0_i32_1 = arith.constant 0 : i32
    return %arg1, %c0_i32, %c0_i32_0 : i32, i32, i32
  }
  func.func @transform_6(%arg0: i32, %arg1: i32) -> (i32, i32, i32) {
    %c0_i32 = arith.constant 0 : i32
    %c0_i32_0 = arith.constant 0 : i32
    %c0_i32_1 = arith.constant 0 : i32
    return %arg1, %c0_i32, %c0_i32_0 : i32, i32, i32
  }
  func.func @transform_7(%arg0: i32, %arg1: i32) -> (i32, i32, i32) {
    %c0_i32 = arith.constant 0 : i32
    %c0_i32_0 = arith.constant 0 : i32
    %c0_i32_1 = arith.constant 0 : i32
    return %arg1, %c0_i32, %c0_i32_0 : i32, i32, i32
  }
  func.func @transform_8(%arg0: i32, %arg1: i32) -> (i32, i32, i32) {
    %c0_i32 = arith.constant 0 : i32
    %c0_i32_0 = arith.constant 0 : i32
    %c0_i32_1 = arith.constant 0 : i32
    return %arg1, %c0_i32, %c0_i32_0 : i32, i32, i32
  }
  func.func @transform_9(%arg0: i32, %arg1: i32) -> (i32, i32, i32) {
    %c0_i32 = arith.constant 0 : i32
    %c0_i32_0 = arith.constant 0 : i32
    %c0_i32_1 = arith.constant 0 : i32
    return %arg1, %c0_i32, %c0_i32_0 : i32, i32, i32
  }
  func.func @transform_10(%arg0: i32, %arg1: i32) -> (i32, i32, i32) {
    %c0_i32 = arith.constant 0 : i32
    %c0_i32_0 = arith.constant 0 : i32
    %c0_i32_1 = arith.constant 0 : i32
    return %arg1, %c0_i32, %c0_i32_0 : i32, i32, i32
  }
  func.func @transform_11(%arg0: i32, %arg1: i32) -> (i32, i32, i32) {
    %c0_i32 = arith.constant 0 : i32
    %c0_i32_0 = arith.constant 0 : i32
    %c0_i32_1 = arith.constant 0 : i32
    return %arg1, %c0_i32, %c0_i32_0 : i32, i32, i32
  }
  func.func @transform_12(%arg0: i32, %arg1: i32) -> (i32, i32, i32) {
    %c0_i32 = arith.constant 0 : i32
    %c0_i32_0 = arith.constant 0 : i32
    %c0_i32_1 = arith.constant 0 : i32
    return %arg1, %c0_i32, %c0_i32_0 : i32, i32, i32
  }
  func.func @transform_13(%arg0: i32, %arg1: i32) -> (i32, i32, i32) {
    %c0_i32 = arith.constant 0 : i32
    %c0_i32_0 = arith.constant 0 : i32
    %c0_i32_1 = arith.constant 0 : i32
    return %arg1, %c0_i32, %c0_i32_0 : i32, i32, i32
  }
  func.func @transform_14(%arg0: i32, %arg1: i32) -> (i32, i32, i32) {
    %c0_i32 = arith.constant 0 : i32
    %c0_i32_0 = arith.constant 0 : i32
    %c0_i32_1 = arith.constant 0 : i32
    return %arg1, %c0_i32, %c0_i32_0 : i32, i32, i32
  }
  func.func @transform_15(%arg0: i32, %arg1: i32) -> (i32, i32, i32) {
    %c0_i32 = arith.constant 0 : i32
    %c0_i32_0 = arith.constant 0 : i32
    %c0_i32_1 = arith.constant 0 : i32
    return %arg1, %c0_i32, %c0_i32_0 : i32, i32, i32
  }
  func.func @transform_16(%arg0: i32, %arg1: i32) -> (i32, i32, i32) {
    %c0_i32 = arith.constant 0 : i32
    %c0_i32_0 = arith.constant 0 : i32
    %c0_i32_1 = arith.constant 0 : i32
    return %arg1, %c0_i32, %c0_i32_0 : i32, i32, i32
  }
  func.func @transform_17(%arg0: i32, %arg1: i32) -> (i32, i32, i32) {
    %c0_i32 = arith.constant 0 : i32
    %c0_i32_0 = arith.constant 0 : i32
    %c0_i32_1 = arith.constant 0 : i32
    return %arg0, %c0_i32, %c0_i32_0 : i32, i32, i32
  }
}

</mosaic_0001>

<llo_original>
// kernel: tpu_custom_call.1
$region0: #{tpu_custom_call.1}
  #allocation0 [shape = 'u32[]', space=smem, size = 0x4, offset = 0x4, fixed_abs, tag = 'smem constant byte address 0x4 - core index']
  #allocation1 [shape = 'u32[144,128]{1,0:T(1,128)}', space=vmem, size = 0x12000, scoped, tag = 'internal scratch']
  %s0 = inlined_call_operand.hbm [shape: f32[2,8,32], index: 0, kind: input, shape index: {}]
  %s1 = inlined_call_operand.vmem [shape: f32[2,1,32], index: 1, kind: input, shape index: {}]
  %s2 = inlined_call_operand.vmem [shape: f32[2,1,32], index: 2, kind: input, shape index: {}]
  %s3 = inlined_call_operand.vmem [shape: f32[2,32,32], index: 3, kind: input, shape index: {}]
  %s4 = inlined_call_operand.vmem [shape: f32[2,1,32], index: 4, kind: input, shape index: {}]
  %s5 = inlined_call_operand.vmem [shape: f32[2,32,32], index: 5, kind: input, shape index: {}]
  %s6 = inlined_call_operand.vmem [shape: f32[2,1,32], index: 6, kind: input, shape index: {}]
  %s7 = inlined_call_operand.vmem [shape: f32[2,32,32], index: 7, kind: input, shape index: {}]
  %s8 = inlined_call_operand.vmem [shape: f32[2,1,32], index: 8, kind: input, shape index: {}]
  %s9 = inlined_call_operand.hbm [shape: f32[2,32,32], index: 9, kind: input, shape index: {}]
  %s10 = inlined_call_operand.vmem [shape: f32[2,1,32], index: 10, kind: input, shape index: {}]
  %s11 = inlined_call_operand.vmem [shape: f32[2,1,32], index: 11, kind: input, shape index: {}]
  %s12 = inlined_call_operand.vmem [shape: f32[2,1,32], index: 12, kind: input, shape index: {}]
  %s13 = inlined_call_operand.hbm [shape: f32[2,32,64], index: 13, kind: input, shape index: {}]
  %s14 = inlined_call_operand.vmem [shape: f32[2,1,64], index: 14, kind: input, shape index: {}]
  %s15 = inlined_call_operand.vmem [shape: f32[2,64,32], index: 15, kind: input, shape index: {}]
  %s16 = inlined_call_operand.vmem [shape: f32[2,1,32], index: 16, kind: input, shape index: {}]
  %s17 = inlined_call_operand.hbm [shape: f32[2,8,32], index: 17, kind: output, shape index: {}]
  %s18 = sld [smem:[#allocation0]]
  $region117: #{tpu_custom_call.1} parent=0
    _
  %s20 = ssub.s32 1, %s18
  %s21 = scalar_select 0, %s20, %s18
  $region1: #{tpu_custom_call.1} parent=0
    #allocation2 [shape = 'u8[8192]{0}', space=vmem, size = 0x2000, scoped, tag = 'input window, operand 0']
    #allocation3 [shape = 's32[2]{0}', space=sflag, size = 0x8, scoped, tag = 'scoped memory for tpu_custom_call.1']
    #allocation4 [shape = 's32[2]{0}', space=sflag, size = 0x8, scoped, tag = 'scoped memory for tpu_custom_call.1']
    #allocation5 [shape = 'u8[32768]{0}', space=vmem, size = 0x8000, scoped, tag = 'input window, operand 9']
    #allocation6 [shape = 's32[2]{0}', space=sflag, size = 0x8, scoped, tag = 'scoped memory for tpu_custom_call.1']
    #allocation7 [shape = 'u8[32768]{0}', space=vmem, size = 0x8000, scoped, tag = 'input window, operand 13']
    #allocation8 [shape = 'u8[8192]{0}', space=vmem, size = 0x2000, scoped, tag = 'output window, operand 0']
    %22 = vsyncpa [#allocation3], 0
    %s23 = scalar_lea.sflag [#allocation3], 1
    %24 = vsyncpa %s23, 0
    %25 = vsyncpa [#allocation6], 0
    %s26 = scalar_lea.sflag [#allocation6], 1
    %27 = vsyncpa %s26, 0
    %28 = vsyncpa [#allocation4], 0
    %s29 = scalar_lea.sflag [#allocation4], 1
    %30 = vsyncpa %s29, 0
    loop: start=0, step=1, limit=6
    $region2: #{tpu_custom_call.1} parent=1 // loop_pre_header
      _
    $region3: #{tpu_custom_call.1} parent=1 // loop_header
      %s32 = sphi 0, %s36
      %p33 = scmp.ge.s32.totalorder %s32, 6
      %s39 = sphi 0, %s51
      %s40 = sphi 0, %s47
      %s41 = sphi 0, %s39
      %s42 = sphi 0, %s40
      %s43 = sphi 0, %s41
      %s44 = sphi 0, %s42
      %s54 = sphi 0, %s56
      %s57 = sphi 0, %s54
      %s58 = sphi 0, %s57
      %s74 = sphi 0, %s58
      %s80 = sphi 0, %s82
      %s83 = sphi 0, %s80
      %s84 = sphi 0, %s83
      %s100 = sphi 0, %s84
      %s106 = sphi 0, %s108
      %s109 = sphi 0, %s106
      %s110 = sphi 0, %s109
      %s126 = sphi 0, %s110
      %s132 = sphi 0, %s134
      %s135 = sphi 0, %s132
      %s136 = sphi 0, %s135
      %s152 = sphi 0, %s136
      %s158 = sphi 0, %s160
      %s161 = sphi 0, %s158
      %s162 = sphi 0, %s161
      %s178 = sphi 0, %s162
      %s184 = sphi 0, %s186
      %s187 = sphi 0, %s184
      %s188 = sphi 0, %s187
      %s204 = sphi 0, %s188
      %s210 = sphi 0, %s212
      %s213 = sphi 0, %s210
      %s214 = sphi 0, %s213
      %s230 = sphi 0, %s214
      %s236 = sphi 0, %s238
      %s239 = sphi 0, %s236
      %s240 = sphi 0, %s239
      %s256 = sphi 0, %s240
      %s262 = sphi 0, %s264
      %s265 = sphi 0, %s262
      %s266 = sphi 0, %s265
      %s282 = sphi 0, %s266
      %s288 = sphi 0, %s290
      %s291 = sphi 0, %s288
      %s292 = sphi 0, %s291
      %s308 = sphi 0, %s292
      %s314 = sphi 0, %s316
      %s317 = sphi 0, %s314
      %s318 = sphi 0, %s317
      %s334 = sphi 0, %s318
      %s340 = sphi 0, %s342
      %s343 = sphi 0, %s340
      %s344 = sphi 0, %s343
      %s360 = sphi 0, %s344
      %s366 = sphi 0, %s368
      %s369 = sphi 0, %s366
      %s370 = sphi 0, %s369
      %s386 = sphi 0, %s370
      %s392 = sphi 0, %s394
      %s395 = sphi 0, %s392
      %s396 = sphi 0, %s395
      %s412 = sphi 0, %s396
      %s418 = sphi 0, %s420
      %s421 = sphi 0, %s418
      %s422 = sphi 0, %s421
      %s438 = sphi 0, %s422
      %s444 = sphi 0, %s446
      %s447 = sphi 0, %s444
      %s448 = sphi 0, %s447
      %s464 = sphi 0, %s448
      %s470 = sphi 0, %s472
      %s473 = sphi 0, %s470
      %s474 = sphi 0, %s473
      %s490 = sphi 0, %s474
      %s496 = sphi 0, %s498
      %s499 = sphi 0, %s496
      %s500 = sphi 0, %s499
      %s516 = sphi 0, %s500
    $region4: #{tpu_custom_call.1} parent=1 // loop_header_branch
      %35 = sbr.rel (%p33) target = $region8
    $region5: #{tpu_custom_call.1} parent=1 // loop_body
      %s37 = ssub.s32 %s32, 1
      %s38 = ssub.s32 %s32, 2
      %s45 = sadd.s32 1, %s40
      %p46 = scmp.ge.s32.totalorder %s45, 2
      %s47 = scalar_select %p46, 0, %s45
      %s48 = sadd.s32 1, %s39
      %s49 = scalar_select %p46, %s48, %s39
      %p50 = scmp.ge.s32.totalorder %s49, 2
      %s51 = scalar_select %p50, 0, %s49
      %s52 = ssub.s32 %s39, %s51
      %p53 = scmp.eq.s32.totalorder %s52, 0
      %s55 = sadd.s32 %s54, 1
      %s56 = scalar_select %p53, %s54, %s55
      %p59 = pneg %p53
      %p60 = scmp.eq.s32.totalorder %s32, 3
      %p61 = por %p59, %p60
      %p62 = scmp.ne.s32.totalorder %s54, %s57
      %p63 = scmp.eq.s32.totalorder %s32, 0
      %p64 = por %p62, %p63
      %p65 = scmp.ne.s32.totalorder %s54, %s57
      %p66 = scmp.eq.s32.totalorder %s37, 3
      %p67 = por %p65, %p66
      %p68 = scmp.ne.s32.totalorder %s57, %s58
      %p69 = scmp.eq.s32.totalorder %s37, 0
      %p70 = por %p68, %p69
      %p71 = scmp.ne.s32.totalorder %s57, %s58
      %p72 = scmp.eq.s32.totalorder %s38, 3
      %p73 = por %p71, %p72
      %p75 = scmp.ne.s32.totalorder %s58, %s74
      %p76 = scmp.eq.s32.totalorder %s38, 0
      %p77 = por %p75, %p76
      %s78 = ssub.s32 %s40, %s47
      %p79 = scmp.eq.s32.totalorder %s78, 0
      %s81 = sadd.s32 %s80, 1
      %s82 = scalar_select %p79, %s80, %s81
      %p85 = pneg %p79
      %p86 = scmp.eq.s32.totalorder %s32, 3
      %p87 = por %p85, %p86
      %p88 = scmp.ne.s32.totalorder %s80, %s83
      %p89 = scmp.eq.s32.totalorder %s32, 0
      %p90 = por %p88, %p89
      %p91 = scmp.ne.s32.totalorder %s80, %s83
      %p92 = scmp.eq.s32.totalorder %s37, 3
      %p93 = por %p91, %p92
      %p94 = scmp.ne.s32.totalorder %s83, %s84
      %p95 = scmp.eq.s32.totalorder %s37, 0
      %p96 = por %p94, %p95
      %p97 = scmp.ne.s32.totalorder %s83, %s84
      %p98 = scmp.eq.s32.totalorder %s38, 3
      %p99 = por %p97, %p98
      %p101 = scmp.ne.s32.totalorder %s84, %s100
      %p102 = scmp.eq.s32.totalorder %s38, 0
      %p103 = por %p101, %p102
      %s104 = ssub.s32 %s40, %s47
      %p105 = scmp.eq.s32.totalorder %s104, 0
      %s107 = sadd.s32 %s106, 1
      %s108 = scalar_select %p105, %s106, %s107
      %p111 = pneg %p105
      %p112 = scmp.eq.s32.totalorder %s32, 3
      %p113 = por %p111, %p112
      %p114 = scmp.ne.s32.totalorder %s106, %s109
      %p115 = scmp.eq.s32.totalorder %s32, 0
      %p116 = por %p114, %p115
      %p117 = scmp.ne.s32.totalorder %s106, %s109
      %p118 = scmp.eq.s32.totalorder %s37, 3
      %p119 = por %p117, %p118
      %p120 = scmp.ne.s32.totalorder %s109, %s110
      %p121 = scmp.eq.s32.totalorder %s37, 0
      %p122 = por %p120, %p121
      %p123 = scmp.ne.s32.totalorder %s109, %s110
      %p124 = scmp.eq.s32.totalorder %s38, 3
      %p125 = por %p123, %p124
      %p127 = scmp.ne.s32.totalorder %s110, %s126
      %p128 = scmp.eq.s32.totalorder %s38, 0
      %p129 = por %p127, %p128
      %s130 = ssub.s32 %s40, %s47
      %p131 = scmp.eq.s32.totalorder %s130, 0
      %s133 = sadd.s32 %s132, 1
      %s134 = scalar_select %p131, %s132, %s133
      %p137 = pneg %p131
      %p138 = scmp.eq.s32.totalorder %s32, 3
      %p139 = por %p137, %p138
      %p140 = scmp.ne.s32.totalorder %s132, %s135
      %p141 = scmp.eq.s32.totalorder %s32, 0
      %p142 = por %p140, %p141
      %p143 = scmp.ne.s32.totalorder %s132, %s135
      %p144 = scmp.eq.s32.totalorder %s37, 3
      %p145 = por %p143, %p144
      %p146 = scmp.ne.s32.totalorder %s135, %s136
      %p147 = scmp.eq.s32.totalorder %s37, 0
      %p148 = por %p146, %p147
      %p149 = scmp.ne.s32.totalorder %s135, %s136
      %p150 = scmp.eq.s32.totalorder %s38, 3
      %p151 = por %p149, %p150
      %p153 = scmp.ne.s32.totalorder %s136, %s152
      %p154 = scmp.eq.s32.totalorder %s38, 0
      %p155 = por %p153, %p154
      %s156 = ssub.s32 %s40, %s47
      %p157 = scmp.eq.s32.totalorder %s156, 0
      %s159 = sadd.s32 %s158, 1
      %s160 = scalar_select %p157, %s158, %s159
      %p163 = pneg %p157
      %p164 = scmp.eq.s32.totalorder %s32, 3
      %p165 = por %p163, %p164
      %p166 = scmp.ne.s32.totalorder %s158, %s161
      %p167 = scmp.eq.s32.totalorder %s32, 0
      %p168 = por %p166, %p167
      %p169 = scmp.ne.s32.totalorder %s158, %s161
      %p170 = scmp.eq.s32.totalorder %s37, 3
      %p171 = por %p169, %p170
      %p172 = scmp.ne.s32.totalorder %s161, %s162
      %p173 = scmp.eq.s32.totalorder %s37, 0
      %p174 = por %p172, %p173
      %p175 = scmp.ne.s32.totalorder %s161, %s162
      %p176 = scmp.eq.s32.totalorder %s38, 3
      %p177 = por %p175, %p176
      %p179 = scmp.ne.s32.totalorder %s162, %s178
      %p180 = scmp.eq.s32.totalorder %s38, 0
      %p181 = por %p179, %p180
      %s182 = ssub.s32 %s40, %s47
      %p183 = scmp.eq.s32.totalorder %s182, 0
      %s185 = sadd.s32 %s184, 1
      %s186 = scalar_select %p183, %s184, %s185
      %p189 = pneg %p183
      %p190 = scmp.eq.s32.totalorder %s32, 3
      %p191 = por %p189, %p190
      %p192 = scmp.ne.s32.totalorder %s184, %s187
      %p193 = scmp.eq.s32.totalorder %s32, 0
      %p194 = por %p192, %p193
      %p195 = scmp.ne.s32.totalorder %s184, %s187
      %p196 = scmp.eq.s32.totalorder %s37, 3
      %p197 = por %p195, %p196
      %p198 = scmp.ne.s32.totalorder %s187, %s188
      %p199 = scmp.eq.s32.totalorder %s37, 0
      %p200 = por %p198, %p199
      %p201 = scmp.ne.s32.totalorder %s187, %s188
      %p202 = scmp.eq.s32.totalorder %s38, 3
      %p203 = por %p201, %p202
      %p205 = scmp.ne.s32.totalorder %s188, %s204
      %p206 = scmp.eq.s32.totalorder %s38, 0
      %p207 = por %p205, %p206
      %s208 = ssub.s32 %s40, %s47
      %p209 = scmp.eq.s32.totalorder %s208, 0
      %s211 = sadd.s32 %s210, 1
      %s212 = scalar_select %p209, %s210, %s211
      %p215 = pneg %p209
      %p216 = scmp.eq.s32.totalorder %s32, 3
      %p217 = por %p215, %p216
      %p218 = scmp.ne.s32.totalorder %s210, %s213
      %p219 = scmp.eq.s32.totalorder %s32, 0
      %p220 = por %p218, %p219
      %p221 = scmp.ne.s32.totalorder %s210, %s213
      %p222 = scmp.eq.s32.totalorder %s37, 3
      %p223 = por %p221, %p222
      %p224 = scmp.ne.s32.totalorder %s213, %s214
      %p225 = scmp.eq.s32.totalorder %s37, 0
      %p226 = por %p224, %p225
      %p227 = scmp.ne.s32.totalorder %s213, %s214
      %p228 = scmp.eq.s32.totalorder %s38, 3
      %p229 = por %p227, %p228
      %p231 = scmp.ne.s32.totalorder %s214, %s230
      %p232 = scmp.eq.s32.totalorder %s38, 0
      %p233 = por %p231, %p232
      %s234 = ssub.s32 %s40, %s47
      %p235 = scmp.eq.s32.totalorder %s234, 0
      %s237 = sadd.s32 %s236, 1
      %s238 = scalar_select %p235, %s236, %s237
      %p241 = pneg %p235
      %p242 = scmp.eq.s32.totalorder %s32, 3
      %p243 = por %p241, %p242
      %p244 = scmp.ne.s32.totalorder %s236, %s239
      %p245 = scmp.eq.s32.totalorder %s32, 0
      %p246 = por %p244, %p245
      %p247 = scmp.ne.s32.totalorder %s236, %s239
      %p248 = scmp.eq.s32.totalorder %s37, 3
      %p249 = por %p247, %p248
      %p250 = scmp.ne.s32.totalorder %s239, %s240
      %p251 = scmp.eq.s32.totalorder %s37, 0
      %p252 = por %p250, %p251
      %p253 = scmp.ne.s32.totalorder %s239, %s240
      %p254 = scmp.eq.s32.totalorder %s38, 3
      %p255 = por %p253, %p254
      %p257 = scmp.ne.s32.totalorder %s240, %s256
      %p258 = scmp.eq.s32.totalorder %s38, 0
      %p259 = por %p257, %p258
      %s260 = ssub.s32 %s40, %s47
      %p261 = scmp.eq.s32.totalorder %s260, 0
      %s263 = sadd.s32 %s262, 1
      %s264 = scalar_select %p261, %s262, %s263
      %p267 = pneg %p261
      %p268 = scmp.eq.s32.totalorder %s32, 3
      %p269 = por %p267, %p268
      %p270 = scmp.ne.s32.totalorder %s262, %s265
      %p271 = scmp.eq.s32.totalorder %s32, 0
      %p272 = por %p270, %p271
      %p273 = scmp.ne.s32.totalorder %s262, %s265
      %p274 = scmp.eq.s32.totalorder %s37, 3
      %p275 = por %p273, %p274
      %p276 = scmp.ne.s32.totalorder %s265, %s266
      %p277 = scmp.eq.s32.totalorder %s37, 0
      %p278 = por %p276, %p277
      %p279 = scmp.ne.s32.totalorder %s265, %s266
      %p280 = scmp.eq.s32.totalorder %s38, 3
      %p281 = por %p279, %p280
      %p283 = scmp.ne.s32.totalorder %s266, %s282
      %p284 = scmp.eq.s32.totalorder %s38, 0
      %p285 = por %p283, %p284
      %s286 = ssub.s32 %s40, %s47
      %p287 = scmp.eq.s32.totalorder %s286, 0
      %s289 = sadd.s32 %s288, 1
      %s290 = scalar_select %p287, %s288, %s289
      %p293 = pneg %p287
      %p294 = scmp.eq.s32.totalorder %s32, 3
      %p295 = por %p293, %p294
      %p296 = scmp.ne.s32.totalorder %s288, %s291
      %p297 = scmp.eq.s32.totalorder %s32, 0
      %p298 = por %p296, %p297
      %p299 = scmp.ne.s32.totalorder %s288, %s291
      %p300 = scmp.eq.s32.totalorder %s37, 3
      %p301 = por %p299, %p300
      %p302 = scmp.ne.s32.totalorder %s291, %s292
      %p303 = scmp.eq.s32.totalorder %s37, 0
      %p304 = por %p302, %p303
      %p305 = scmp.ne.s32.totalorder %s291, %s292
      %p306 = scmp.eq.s32.totalorder %s38, 3
      %p307 = por %p305, %p306
      %p309 = scmp.ne.s32.totalorder %s292, %s308
      %p310 = scmp.eq.s32.totalorder %s38, 0
      %p311 = por %p309, %p310
      %s312 = ssub.s32 %s40, %s47
      %p313 = scmp.eq.s32.totalorder %s312, 0
      %s315 = sadd.s32 %s314, 1
      %s316 = scalar_select %p313, %s314, %s315
      %p319 = pneg %p313
      %p320 = scmp.eq.s32.totalorder %s32, 3
      %p321 = por %p319, %p320
      %p322 = scmp.ne.s32.totalorder %s314, %s317
      %p323 = scmp.eq.s32.totalorder %s32, 0
      %p324 = por %p322, %p323
      %p325 = scmp.ne.s32.totalorder %s314, %s317
      %p326 = scmp.eq.s32.totalorder %s37, 3
      %p327 = por %p325, %p326
      %p328 = scmp.ne.s32.totalorder %s317, %s318
      %p329 = scmp.eq.s32.totalorder %s37, 0
      %p330 = por %p328, %p329
      %p331 = scmp.ne.s32.totalorder %s317, %s318
      %p332 = scmp.eq.s32.totalorder %s38, 3
      %p333 = por %p331, %p332
      %p335 = scmp.ne.s32.totalorder %s318, %s334
      %p336 = scmp.eq.s32.totalorder %s38, 0
      %p337 = por %p335, %p336
      %s338 = ssub.s32 %s40, %s47
      %p339 = scmp.eq.s32.totalorder %s338, 0
      %s341 = sadd.s32 %s340, 1
      %s342 = scalar_select %p339, %s340, %s341
      %p345 = pneg %p339
      %p346 = scmp.eq.s32.totalorder %s32, 3
      %p347 = por %p345, %p346
      %p348 = scmp.ne.s32.totalorder %s340, %s343
      %p349 = scmp.eq.s32.totalorder %s32, 0
      %p350 = por %p348, %p349
      %p351 = scmp.ne.s32.totalorder %s340, %s343
      %p352 = scmp.eq.s32.totalorder %s37, 3
      %p353 = por %p351, %p352
      %p354 = scmp.ne.s32.totalorder %s343, %s344
      %p355 = scmp.eq.s32.totalorder %s37, 0
      %p356 = por %p354, %p355
      %p357 = scmp.ne.s32.totalorder %s343, %s344
      %p358 = scmp.eq.s32.totalorder %s38, 3
      %p359 = por %p357, %p358
      %p361 = scmp.ne.s32.totalorder %s344, %s360
      %p362 = scmp.eq.s32.totalorder %s38, 0
      %p363 = por %p361, %p362
      %s364 = ssub.s32 %s40, %s47
      %p365 = scmp.eq.s32.totalorder %s364, 0
      %s367 = sadd.s32 %s366, 1
      %s368 = scalar_select %p365, %s366, %s367
      %p371 = pneg %p365
      %p372 = scmp.eq.s32.totalorder %s32, 3
      %p373 = por %p371, %p372
      %p374 = scmp.ne.s32.totalorder %s366, %s369
      %p375 = scmp.eq.s32.totalorder %s32, 0
      %p376 = por %p374, %p375
      %p377 = scmp.ne.s32.totalorder %s366, %s369
      %p378 = scmp.eq.s32.totalorder %s37, 3
      %p379 = por %p377, %p378
      %p380 = scmp.ne.s32.totalorder %s369, %s370
      %p381 = scmp.eq.s32.totalorder %s37, 0
      %p382 = por %p380, %p381
      %p383 = scmp.ne.s32.totalorder %s369, %s370
      %p384 = scmp.eq.s32.totalorder %s38, 3
      %p385 = por %p383, %p384
      %p387 = scmp.ne.s32.totalorder %s370, %s386
      %p388 = scmp.eq.s32.totalorder %s38, 0
      %p389 = por %p387, %p388
      %s390 = ssub.s32 %s40, %s47
      %p391 = scmp.eq.s32.totalorder %s390, 0
      %s393 = sadd.s32 %s392, 1
      %s394 = scalar_select %p391, %s392, %s393
      %p397 = pneg %p391
      %p398 = scmp.eq.s32.totalorder %s32, 3
      %p399 = por %p397, %p398
      %p400 = scmp.ne.s32.totalorder %s392, %s395
      %p401 = scmp.eq.s32.totalorder %s32, 0
      %p402 = por %p400, %p401
      %p403 = scmp.ne.s32.totalorder %s392, %s395
      %p404 = scmp.eq.s32.totalorder %s37, 3
      %p405 = por %p403, %p404
      %p406 = scmp.ne.s32.totalorder %s395, %s396
      %p407 = scmp.eq.s32.totalorder %s37, 0
      %p408 = por %p406, %p407
      %p409 = scmp.ne.s32.totalorder %s395, %s396
      %p410 = scmp.eq.s32.totalorder %s38, 3
      %p411 = por %p409, %p410
      %p413 = scmp.ne.s32.totalorder %s396, %s412
      %p414 = scmp.eq.s32.totalorder %s38, 0
      %p415 = por %p413, %p414
      %s416 = ssub.s32 %s40, %s47
      %p417 = scmp.eq.s32.totalorder %s416, 0
      %s419 = sadd.s32 %s418, 1
      %s420 = scalar_select %p417, %s418, %s419
      %p423 = pneg %p417
      %p424 = scmp.eq.s32.totalorder %s32, 3
      %p425 = por %p423, %p424
      %p426 = scmp.ne.s32.totalorder %s418, %s421
      %p427 = scmp.eq.s32.totalorder %s32, 0
      %p428 = por %p426, %p427
      %p429 = scmp.ne.s32.totalorder %s418, %s421
      %p430 = scmp.eq.s32.totalorder %s37, 3
      %p431 = por %p429, %p430
      %p432 = scmp.ne.s32.totalorder %s421, %s422
      %p433 = scmp.eq.s32.totalorder %s37, 0
      %p434 = por %p432, %p433
      %p435 = scmp.ne.s32.totalorder %s421, %s422
      %p436 = scmp.eq.s32.totalorder %s38, 3
      %p437 = por %p435, %p436
      %p439 = scmp.ne.s32.totalorder %s422, %s438
      %p440 = scmp.eq.s32.totalorder %s38, 0
      %p441 = por %p439, %p440
      %s442 = ssub.s32 %s40, %s47
      %p443 = scmp.eq.s32.totalorder %s442, 0
      %s445 = sadd.s32 %s444, 1
      %s446 = scalar_select %p443, %s444, %s445
      %p449 = pneg %p443
      %p450 = scmp.eq.s32.totalorder %s32, 3
      %p451 = por %p449, %p450
      %p452 = scmp.ne.s32.totalorder %s444, %s447
      %p453 = scmp.eq.s32.totalorder %s32, 0
      %p454 = por %p452, %p453
      %p455 = scmp.ne.s32.totalorder %s444, %s447
      %p456 = scmp.eq.s32.totalorder %s37, 3
      %p457 = por %p455, %p456
      %p458 = scmp.ne.s32.totalorder %s447, %s448
      %p459 = scmp.eq.s32.totalorder %s37, 0
      %p460 = por %p458, %p459
      %p461 = scmp.ne.s32.totalorder %s447, %s448
      %p462 = scmp.eq.s32.totalorder %s38, 3
      %p463 = por %p461, %p462
      %p465 = scmp.ne.s32.totalorder %s448, %s464
      %p466 = scmp.eq.s32.totalorder %s38, 0
      %p467 = por %p465, %p466
      %s468 = ssub.s32 %s40, %s47
      %p469 = scmp.eq.s32.totalorder %s468, 0
      %s471 = sadd.s32 %s470, 1
      %s472 = scalar_select %p469, %s470, %s471
      %p475 = pneg %p469
      %p476 = scmp.eq.s32.totalorder %s32, 3
      %p477 = por %p475, %p476
      %p478 = scmp.ne.s32.totalorder %s470, %s473
      %p479 = scmp.eq.s32.totalorder %s32, 0
      %p480 = por %p478, %p479
      %p481 = scmp.ne.s32.totalorder %s470, %s473
      %p482 = scmp.eq.s32.totalorder %s37, 3
      %p483 = por %p481, %p482
      %p484 = scmp.ne.s32.totalorder %s473, %s474
      %p485 = scmp.eq.s32.totalorder %s37, 0
      %p486 = por %p484, %p485
      %p487 = scmp.ne.s32.totalorder %s473, %s474
      %p488 = scmp.eq.s32.totalorder %s38, 3
      %p489 = por %p487, %p488
      %p491 = scmp.ne.s32.totalorder %s474, %s490
      %p492 = scmp.eq.s32.totalorder %s38, 0
      %p493 = por %p491, %p492
      %s494 = ssub.s32 %s39, %s51
      %p495 = scmp.eq.s32.totalorder %s494, 0
      %s497 = sadd.s32 %s496, 1
      %s498 = scalar_select %p495, %s496, %s497
      %p501 = pneg %p495
      %p502 = scmp.eq.s32.totalorder %s32, 3
      %p503 = por %p501, %p502
      %p504 = scmp.ne.s32.totalorder %s496, %s499
      %p505 = scmp.eq.s32.totalorder %s32, 0
      %p506 = por %p504, %p505
      %p507 = scmp.ne.s32.totalorder %s496, %s499
      %p508 = scmp.eq.s32.totalorder %s37, 3
      %p509 = por %p507, %p508
      %p510 = scmp.ne.s32.totalorder %s499, %s500
      %p511 = scmp.eq.s32.totalorder %s37, 0
      %p512 = por %p510, %p511
      %p513 = scmp.ne.s32.totalorder %s499, %s500
      %p514 = scmp.eq.s32.totalorder %s38, 3
      %p515 = por %p513, %p514
      %p517 = scmp.ne.s32.totalorder %s500, %s516
      %p518 = scmp.eq.s32.totalorder %s38, 0
      %p519 = por %p517, %p518
      %p520 = scmp.le.s32.totalorder 1, %s32
      %p521 = scmp.lt.s32.totalorder %s32, 5
      %p522 = pnand %p520, %p521
      %p523 = pneg %p522
      // Predicated region
      $region9: #{tpu_custom_call.1} parent=5 // pred_check
        _
      $region10: #{tpu_custom_call.1} parent=5 // pred_check_branch
        %525 = sbr.rel (%p522) target = $region12
      $region11: #{tpu_custom_call.1} parent=5 // pred_region
        %s526 = ssub.s32 %s32, 1
      $region12: #{tpu_custom_call.1} parent=5 // pred_fallthru
        _
      %p527 = scmp.lt.s32.totalorder %s32, 4
      // Predicated region
      $region13: #{tpu_custom_call.1} parent=5 // pred_check
        %p528 = pneg %p527
      $region14: #{tpu_custom_call.1} parent=5 // pred_check_branch
        %530 = sbr.rel (%p528) target = $region16
      $region15: #{tpu_custom_call.1} parent=5 // pred_region
        // Predicated region
        $region17: #{tpu_custom_call.1} parent=15 // pred_check
          %p531 = pneg %p64
        $region18: #{tpu_custom_call.1} parent=15 // pred_check_branch
          %533 = sbr.rel (%p531) target = $region20
        $region19: #{tpu_custom_call.1} parent=15 // pred_region
          %s534 = sand.u32 %s54, 1
          %s535 = scalar_lea.sflag [#allocation3], %s534
          %s536 = sand.u32 %s54, 1
          %s537 = smul.addr %s536, 8
          %s538 = scalar_lea.vmem [#allocation2], %s537
          %s540 = ssub.s32 128, 128
          %541 = vsyncadd %s535, %s540
          %s542 = smul.addr %s39, 128
          %s543 = scalar_lea.hbm %s0, %s542
          %s545 = sshll.u32 %s538, 4
          %s546 = int_to_ptr.vmem [resolvable:$true] %s545
          %548 = dma.hbm_to_vmem [thread:$0]  %s543, 128, %s546, %s535
        $region20: #{tpu_custom_call.1} parent=15 // pred_fallthru
          _
        // Predicated region
        $region21: #{tpu_custom_call.1} parent=15 // pred_check
          %p549 = pneg %p90
        $region22: #{tpu_custom_call.1} parent=15 // pred_check_branch
          %551 = sbr.rel (%p549) target = $region24
        $region23: #{tpu_custom_call.1} parent=15 // pred_region
          %p552 = scmp.lt.s32.totalorder %s40, 1
          %s553 = scalar_select %p552, %s40, 1
          %s554 = scalar_lea.vmem %s1, %s553
        $region24: #{tpu_custom_call.1} parent=15 // pred_fallthru
          _
        // Predicated region
        $region25: #{tpu_custom_call.1} parent=15 // pred_check
          %p555 = pneg %p116
        $region26: #{tpu_custom_call.1} parent=15 // pred_check_branch
          %557 = sbr.rel (%p555) target = $region28
        $region27: #{tpu_custom_call.1} parent=15 // pred_region
          %p558 = scmp.lt.s32.totalorder %s40, 1
          %s559 = scalar_select %p558, %s40, 1
          %s560 = scalar_lea.vmem %s2, %s559
        $region28: #{tpu_custom_call.1} parent=15 // pred_fallthru
          _
        // Predicated region
        $region29: #{tpu_custom_call.1} parent=15 // pred_check
          %p561 = pneg %p142
        $region30: #{tpu_custom_call.1} parent=15 // pred_check_branch
          %563 = sbr.rel (%p561) target = $region32
        $region31: #{tpu_custom_call.1} parent=15 // pred_region
          %p564 = scmp.lt.s32.totalorder %s40, 1
          %s565 = scalar_select %p564, %s40, 1
          %s566 = smul.addr %s565, 4
          %s567 = smul.addr %s566, 8
          %s568 = scalar_lea.vmem %s3, %s567
        $region32: #{tpu_custom_call.1} parent=15 // pred_fallthru
          _
        // Predicated region
        $region33: #{tpu_custom_call.1} parent=15 // pred_check
          %p569 = pneg %p168
        $region34: #{tpu_custom_call.1} parent=15 // pred_check_branch
          %571 = sbr.rel (%p569) target = $region36
        $region35: #{tpu_custom_call.1} parent=15 // pred_region
          %p572 = scmp.lt.s32.totalorder %s40, 1
          %s573 = scalar_select %p572, %s40, 1
          %s574 = scalar_lea.vmem %s4, %s573
        $region36: #{tpu_custom_call.1} parent=15 // pred_fallthru
          _
        // Predicated region
        $region37: #{tpu_custom_call.1} parent=15 // pred_check
          %p575 = pneg %p194
        $region38: #{tpu_custom_call.1} parent=15 // pred_check_branch
          %577 = sbr.rel (%p575) target = $region40
        $region39: #{tpu_custom_call.1} parent=15 // pred_region
          %p578 = scmp.lt.s32.totalorder %s40, 1
          %s579 = scalar_select %p578, %s40, 1
          %s580 = smul.addr %s579, 4
          %s581 = smul.addr %s580, 8
          %s582 = scalar_lea.vmem %s5, %s581
        $region40: #{tpu_custom_call.1} parent=15 // pred_fallthru
          _
        // Predicated region
        $region41: #{tpu_custom_call.1} parent=15 // pred_check
          %p583 = pneg %p220
        $region42: #{tpu_custom_call.1} parent=15 // pred_check_branch
          %585 = sbr.rel (%p583) target = $region44
        $region43: #{tpu_custom_call.1} parent=15 // pred_region
          %p586 = scmp.lt.s32.totalorder %s40, 1
          %s587 = scalar_select %p586, %s40, 1
          %s588 = scalar_lea.vmem %s6, %s587
        $region44: #{tpu_custom_call.1} parent=15 // pred_fallthru
          _
        // Predicated region
        $region45: #{tpu_custom_call.1} parent=15 // pred_check
          %p589 = pneg %p246
        $region46: #{tpu_custom_call.1} parent=15 // pred_check_branch
          %591 = sbr.rel (%p589) target = $region48
        $region47: #{tpu_custom_call.1} parent=15 // pred_region
          %p592 = scmp.lt.s32.totalorder %s40, 1
          %s593 = scalar_select %p592, %s40, 1
          %s594 = smul.addr %s593, 4
          %s595 = smul.addr %s594, 8
          %s596 = scalar_lea.vmem %s7, %s595
        $region48: #{tpu_custom_call.1} parent=15 // pred_fallthru
          _
        // Predicated region
        $region49: #{tpu_custom_call.1} parent=15 // pred_check
          %p597 = pneg %p272
        $region50: #{tpu_custom_call.1} parent=15 // pred_check_branch
          %599 = sbr.rel (%p597) target = $region52
        $region51: #{tpu_custom_call.1} parent=15 // pred_region
          %p600 = scmp.lt.s32.totalorder %s40, 1
          %s601 = scalar_select %p600, %s40, 1
          %s602 = scalar_lea.vmem %s8, %s601
        $region52: #{tpu_custom_call.1} parent=15 // pred_fallthru
          _
        // Predicated region
        $region53: #{tpu_custom_call.1} parent=15 // pred_check
          %p603 = pneg %p298
        $region54: #{tpu_custom_call.1} parent=15 // pred_check_branch
          %605 = sbr.rel (%p603) target = $region56
        $region55: #{tpu_custom_call.1} parent=15 // pred_region
          %s606 = sand.u32 %s32, 1
          %s607 = scalar_lea.sflag [#allocation6], %s606
          %s608 = sand.u32 %s288, 1
          %s609 = smul.addr %s608, 32
          %s610 = scalar_lea.vmem [#allocation5], %s609
          %s612 = ssub.s32 512, 512
          %613 = vsyncadd %s607, %s612
          %s614 = smul.addr %s40, 4
          %s615 = smul.addr %s614, 128
          %s616 = scalar_lea.hbm %s9, %s615
          %s617 = sshll.u32 %s610, 4
          %s618 = int_to_ptr.vmem [resolvable:$true] %s617
          %623 = dma.hbm_to_vmem [thread:$0]  %s616, 512, %s618, %s607, 128, 128, 8
        $region56: #{tpu_custom_call.1} parent=15 // pred_fallthru
          _
        // Predicated region
        $region57: #{tpu_custom_call.1} parent=15 // pred_check
          %p624 = pneg %p324
        $region58: #{tpu_custom_call.1} parent=15 // pred_check_branch
          %626 = sbr.rel (%p624) target = $region60
        $region59: #{tpu_custom_call.1} parent=15 // pred_region
          %p627 = scmp.lt.s32.totalorder %s40, 1
          %s628 = scalar_select %p627, %s40, 1
          %s629 = scalar_lea.vmem %s10, %s628
        $region60: #{tpu_custom_call.1} parent=15 // pred_fallthru
          _
        // Predicated region
        $region61: #{tpu_custom_call.1} parent=15 // pred_check
          %p630 = pneg %p350
        $region62: #{tpu_custom_call.1} parent=15 // pred_check_branch
          %632 = sbr.rel (%p630) target = $region64
        $region63: #{tpu_custom_call.1} parent=15 // pred_region
          %p633 = scmp.lt.s32.totalorder %s40, 1
          %s634 = scalar_select %p633, %s40, 1
          %s635 = scalar_lea.vmem %s11, %s634
        $region64: #{tpu_custom_call.1} parent=15 // pred_fallthru
          _
        // Predicated region
        $region65: #{tpu_custom_call.1} parent=15 // pred_check
          %p636 = pneg %p376
        $region66: #{tpu_custom_call.1} parent=15 // pred_check_branch
          %638 = sbr.rel (%p636) target = $region68
        $region67: #{tpu_custom_call.1} parent=15 // pred_region
          %p639 = scmp.lt.s32.totalorder %s40, 1
          %s640 = scalar_select %p639, %s40, 1
          %s641 = scalar_lea.vmem %s12, %s640
        $region68: #{tpu_custom_call.1} parent=15 // pred_fallthru
          _
        // Predicated region
        $region69: #{tpu_custom_call.1} parent=15 // pred_check
          %p642 = pneg %p402
        $region70: #{tpu_custom_call.1} parent=15 // pred_check_branch
          %644 = sbr.rel (%p642) target = $region72
        $region71: #{tpu_custom_call.1} parent=15 // pred_region
          %s645 = sand.u32 %s32, 1
          %s646 = scalar_lea.sflag [#allocation6], %s645
          %s647 = sand.u32 %s392, 1
          %s648 = smul.addr %s647, 32
          %s649 = scalar_lea.vmem [#allocation7], %s648
          %s651 = ssub.s32 512, 512
          %652 = vsyncadd %s646, %s651
          %s653 = smul.addr %s40, 4
          %s654 = smul.addr %s653, 128
          %s655 = scalar_lea.hbm %s13, %s654
          %s656 = sshll.u32 %s649, 4
          %s657 = int_to_ptr.vmem [resolvable:$true] %s656
          %662 = dma.hbm_to_vmem [thread:$0]  %s655, 512, %s657, %s646, 128, 128, 8
        $region72: #{tpu_custom_call.1} parent=15 // pred_fallthru
          _
        // Predicated region
        $region73: #{tpu_custom_call.1} parent=15 // pred_check
          %p663 = pneg %p428
        $region74: #{tpu_custom_call.1} parent=15 // pred_check_branch
          %665 = sbr.rel (%p663) target = $region76
        $region75: #{tpu_custom_call.1} parent=15 // pred_region
          %p666 = scmp.lt.s32.totalorder %s40, 1
          %s667 = scalar_select %p666, %s40, 1
          %s668 = scalar_lea.vmem %s14, %s667
        $region76: #{tpu_custom_call.1} parent=15 // pred_fallthru
          _
        // Predicated region
        $region77: #{tpu_custom_call.1} parent=15 // pred_check
          %p669 = pneg %p454
        $region78: #{tpu_custom_call.1} parent=15 // pred_check_branch
          %671 = sbr.rel (%p669) target = $region80
        $region79: #{tpu_custom_call.1} parent=15 // pred_region
          %p672 = scmp.lt.s32.totalorder %s40, 1
          %s673 = scalar_select %p672, %s40, 1
          %s674 = smul.addr %s673, 8
          %s675 = smul.addr %s674, 8
          %s676 = scalar_lea.vmem %s15, %s675
        $region80: #{tpu_custom_call.1} parent=15 // pred_fallthru
          _
        // Predicated region
        $region81: #{tpu_custom_call.1} parent=15 // pred_check
          %p677 = pneg %p480
        $region82: #{tpu_custom_call.1} parent=15 // pred_check_branch
          %679 = sbr.rel (%p677) target = $region84
        $region83: #{tpu_custom_call.1} parent=15 // pred_region
          %p680 = scmp.lt.s32.totalorder %s40, 1
          %s681 = scalar_select %p680, %s40, 1
          %s682 = scalar_lea.vmem %s16, %s681
        $region84: #{tpu_custom_call.1} parent=15 // pred_fallthru
          _
      $region16: #{tpu_custom_call.1} parent=5 // pred_fallthru
        _
      %p683 = scmp.le.s32.totalorder 1, %s32
      %p684 = scmp.lt.s32.totalorder %s32, 5
      %p685 = pnand %p683, %p684
      %p686 = pneg %p685
      // Predicated region
      $region85: #{tpu_custom_call.1} parent=5 // pred_check
        _
      $region86: #{tpu_custom_call.1} parent=5 // pred_check_branch
        %688 = sbr.rel (%p685) target = $region88
      $region87: #{tpu_custom_call.1} parent=5 // pred_region
        %s689 = ssub.s32 %s32, 1
        %s690 = sand.u32 %s57, 1
        %s691 = scalar_lea.sflag [#allocation3], %s690
        %s692 = sand.u32 %s57, 1
        %s693 = smul.addr %s692, 8
        %s694 = scalar_lea.vmem [#allocation2], %s693
        // Predicated region
        $region89: #{tpu_custom_call.1} parent=87 // pred_check
          %p695 = pneg %p70
        $region90: #{tpu_custom_call.1} parent=87 // pred_check_branch
          %697 = sbr.rel (%p695) target = $region92
        $region91: #{tpu_custom_call.1} parent=87 // pred_region
          %698 = dma.done %s691, 128
        $region92: #{tpu_custom_call.1} parent=87 // pred_fallthru
          _
        %s699 = sand.u32 %s37, 1
        %s700 = scalar_lea.sflag [#allocation6], %s699
        %s701 = sand.u32 %s291, 1
        %s702 = smul.addr %s701, 32
        %s703 = scalar_lea.vmem [#allocation5], %s702
        // Predicated region
        $region93: #{tpu_custom_call.1} parent=87 // pred_check
          %p704 = pneg %p304
        $region94: #{tpu_custom_call.1} parent=87 // pred_check_branch
          %706 = sbr.rel (%p704) target = $region96
        $region95: #{tpu_custom_call.1} parent=87 // pred_region
          %707 = dma.done %s700, 512
        $region96: #{tpu_custom_call.1} parent=87 // pred_fallthru
          _
        %s708 = sand.u32 %s37, 1
        %s709 = scalar_lea.sflag [#allocation6], %s708
        %s710 = sand.u32 %s395, 1
        %s711 = smul.addr %s710, 32
        %s712 = scalar_lea.vmem [#allocation7], %s711
        // Predicated region
        $region97: #{tpu_custom_call.1} parent=87 // pred_check
          %p713 = pneg %p408
        $region98: #{tpu_custom_call.1} parent=87 // pred_check_branch
          %715 = sbr.rel (%p713) target = $region100
        $region99: #{tpu_custom_call.1} parent=87 // pred_region
          %716 = dma.done %s709, 512
        $region100: #{tpu_custom_call.1} parent=87 // pred_fallthru
          _
        %s717 = sand.u32 %s57, 1
        %s718 = scalar_lea.sflag [#allocation3], %s717
        %s719 = sand.u32 %s57, 1
        %s720 = smul.addr %s719, 8
        %s721 = scalar_lea.vmem [#allocation2], %s720
        %p722 = pneg %p70
        %p723 = pneg %p67
        %p724 = scmp.lt.s32.totalorder %s42, 1
        %s725 = scalar_select %p724, %s42, 1
        %s726 = scalar_lea.vmem %s1, %s725
        %p727 = pneg %p96
        %p728 = pneg %p93
        %p729 = scmp.lt.s32.totalorder %s42, 1
        %s730 = scalar_select %p729, %s42, 1
        %s731 = scalar_lea.vmem %s2, %s730
        %p732 = pneg %p122
        %p733 = pneg %p119
        %p734 = scmp.lt.s32.totalorder %s42, 1
        %s735 = scalar_select %p734, %s42, 1
        %s736 = smul.addr %s735, 4
        %s737 = smul.addr %s736, 8
        %s738 = scalar_lea.vmem %s3, %s737
        %p739 = pneg %p148
        %p740 = pneg %p145
        %p741 = scmp.lt.s32.totalorder %s42, 1
        %s742 = scalar_select %p741, %s42, 1
        %s743 = scalar_lea.vmem %s4, %s742
        %p744 = pneg %p174
        %p745 = pneg %p171
        %p746 = scmp.lt.s32.totalorder %s42, 1
        %s747 = scalar_select %p746, %s42, 1
        %s748 = smul.addr %s747, 4
        %s749 = smul.addr %s748, 8
        %s750 = scalar_lea.vmem %s5, %s749
        %p751 = pneg %p200
        %p752 = pneg %p197
        %p753 = scmp.lt.s32.totalorder %s42, 1
        %s754 = scalar_select %p753, %s42, 1
        %s755 = scalar_lea.vmem %s6, %s754
        %p756 = pneg %p226
        %p757 = pneg %p223
        %p758 = scmp.lt.s32.totalorder %s42, 1
        %s759 = scalar_select %p758, %s42, 1
        %s760 = smul.addr %s759, 4
        %s761 = smul.addr %s760, 8
        %s762 = scalar_lea.vmem %s7, %s761
        %p763 = pneg %p252
        %p764 = pneg %p249
        %p765 = scmp.lt.s32.totalorder %s42, 1
        %s766 = scalar_select %p765, %s42, 1
        %s767 = scalar_lea.vmem %s8, %s766
        %p768 = pneg %p278
        %p769 = pneg %p275
        %s770 = sand.u32 %s37, 1
        %s771 = scalar_lea.sflag [#allocation6], %s770
        %s772 = sand.u32 %s291, 1
        %s773 = smul.addr %s772, 32
        %s774 = scalar_lea.vmem [#allocation5], %s773
        %p775 = pneg %p304
        %p776 = pneg %p301
        %p777 = scmp.lt.s32.totalorder %s42, 1
        %s778 = scalar_select %p777, %s42, 1
        %s779 = scalar_lea.vmem %s10, %s778
        %p780 = pneg %p330
        %p781 = pneg %p327
        %p782 = scmp.lt.s32.totalorder %s42, 1
        %s783 = scalar_select %p782, %s42, 1
        %s784 = scalar_lea.vmem %s11, %s783
        %p785 = pneg %p356
        %p786 = pneg %p353
        %p787 = scmp.lt.s32.totalorder %s42, 1
        %s788 = scalar_select %p787, %s42, 1
        %s789 = scalar_lea.vmem %s12, %s788
        %p790 = pneg %p382
        %p791 = pneg %p379
        %s792 = sand.u32 %s37, 1
        %s793 = scalar_lea.sflag [#allocation6], %s792
        %s794 = sand.u32 %s395, 1
        %s795 = smul.addr %s794, 32
        %s796 = scalar_lea.vmem [#allocation7], %s795
        %p797 = pneg %p408
        %p798 = pneg %p405
        %p799 = scmp.lt.s32.totalorder %s42, 1
        %s800 = scalar_select %p799, %s42, 1
        %s801 = scalar_lea.vmem %s14, %s800
        %p802 = pneg %p434
        %p803 = pneg %p431
        %p804 = scmp.lt.s32.totalorder %s42, 1
        %s805 = scalar_select %p804, %s42, 1
        %s806 = smul.addr %s805, 8
        %s807 = smul.addr %s806, 8
        %s808 = scalar_lea.vmem %s15, %s807
        %p809 = pneg %p460
        %p810 = pneg %p457
        %p811 = scmp.lt.s32.totalorder %s42, 1
        %s812 = scalar_select %p811, %s42, 1
        %s813 = scalar_lea.vmem %s16, %s812
        %p814 = pneg %p486
        %p815 = pneg %p483
        %p816 = pneg %p512
        %p817 = pneg %p509
        %s818 = sand.u32 %s499, 1
        %s819 = scalar_lea.sflag [#allocation4], %s818
        %s820 = sand.u32 %s499, 1
        %s821 = smul.addr %s820, 8
        %s822 = scalar_lea.vmem [#allocation8], %s821
        %p823 = scmp.lt.s32.totalorder %s42, 1
        %s824 = scalar_select %p823, %s42, 1
        %s825 = scalar_lea.vmem %s1, %s824
        %p826 = scmp.lt.s32.totalorder %s42, 1
        %s827 = scalar_select %p826, %s42, 1
        %s828 = scalar_lea.vmem %s2, %s827
        %p829 = scmp.lt.s32.totalorder %s42, 1
        %s830 = scalar_select %p829, %s42, 1
        %s831 = smul.addr %s830, 4
        %s832 = smul.addr %s831, 8
        %s833 = scalar_lea.vmem %s3, %s832
        %p834 = scmp.lt.s32.totalorder %s42, 1
        %s835 = scalar_select %p834, %s42, 1
        %s836 = scalar_lea.vmem %s4, %s835
        %p837 = scmp.lt.s32.totalorder %s42, 1
        %s838 = scalar_select %p837, %s42, 1
        %s839 = smul.addr %s838, 4
        %s840 = smul.addr %s839, 8
        %s841 = scalar_lea.vmem %s5, %s840
        %p842 = scmp.lt.s32.totalorder %s42, 1
        %s843 = scalar_select %p842, %s42, 1
        %s844 = scalar_lea.vmem %s6, %s843
        %p845 = scmp.lt.s32.totalorder %s42, 1
        %s846 = scalar_select %p845, %s42, 1
        %s847 = smul.addr %s846, 4
        %s848 = smul.addr %s847, 8
        %s849 = scalar_lea.vmem %s7, %s848
        %p850 = scmp.lt.s32.totalorder %s42, 1
        %s851 = scalar_select %p850, %s42, 1
        %s852 = scalar_lea.vmem %s8, %s851
        %p853 = scmp.lt.s32.totalorder %s42, 1
        %s854 = scalar_select %p853, %s42, 1
        %s855 = scalar_lea.vmem %s10, %s854
        %p856 = scmp.lt.s32.totalorder %s42, 1
        %s857 = scalar_select %p856, %s42, 1
        %s858 = scalar_lea.vmem %s11, %s857
        %p859 = scmp.lt.s32.totalorder %s42, 1
        %s860 = scalar_select %p859, %s42, 1
        %s861 = scalar_lea.vmem %s12, %s860
        %p862 = scmp.lt.s32.totalorder %s42, 1
        %s863 = scalar_select %p862, %s42, 1
        %s864 = scalar_lea.vmem %s14, %s863
        %p865 = scmp.lt.s32.totalorder %s42, 1
        %s866 = scalar_select %p865, %s42, 1
        %s867 = smul.addr %s866, 8
        %s868 = smul.addr %s867, 8
        %s869 = scalar_lea.vmem %s15, %s868
        %p870 = scmp.lt.s32.totalorder %s42, 1
        %s871 = scalar_select %p870, %s42, 1
        %s872 = scalar_lea.vmem %s16, %s871
        %p873 = scmp.eq.s32.totalorder %s42, 0
        // Predicated region
        $region101: #{tpu_custom_call.1} parent=87 // pred_check
          %p874 = pneg %p873
        $region102: #{tpu_custom_call.1} parent=87 // pred_check_branch
          %876 = sbr.rel (%p874) target = $region104
        $region103: #{tpu_custom_call.1} parent=87 // pred_region
          %v877 = vld [vmem:[%s694] sm:$0xff]
          %vm878 = vcmask 261120
          %879 = vst.msk [vmem:[%s822] sm:$0xff] %vm878, %v877
        $region104: #{tpu_custom_call.1} parent=87 // pred_fallthru
          _
        %v880 = vld [vmem:[%s822] sm:$0xff]
        %v881 = vld [vmem:[%s825] sm:$0x1]
        %v882 = vld [vmem:[%s828] sm:$0x1]
        %vm883 = vcmask 261120
        %v884 = vsel %vm883, %v880, 0.0
        %885 = vadd.xlane.f32.xlu0 %v884
        %v886 = vpop.xlane.xlu0 %885
        %v887 = vrcp.pop 32.0
        %v888 = vmul.f32 %v886, %v887
        %v889 = vsub.f32 %v880, %v888
        %v890 = vmul.f32 %v889, %v889
        %v891 = vsel %vm883, %v890, 0.0
        %892 = vadd.xlane.f32.xlu0 %v891
        %v893 = vpop.xlane.xlu0 %892
        %v894 = vmul.f32 %v893, %v887
        %v895 = vadd.f32 %v894, 1e-05
        %v896 = vrsqrt.pop %v895
        %v897 = vmul.f32 %v889, %v896
        %v899 = vlaneseq
        %v900 = vshrl.u32 %v899, 7
        %v901 = vsub.s32 0, %v900
        %v902 = vrot.slane %v881, %v901
        %v904 = vmul.f32 %v897, %v902
        %v906 = vlaneseq
        %v907 = vshrl.u32 %v906, 7
        %v908 = vsub.s32 0, %v907
        %v909 = vrot.slane %v882, %v908
        %v911 = vadd.f32 %v904, %v909
        %v912 = vld [vmem:[%s833] sm:$0xff]
        %v913 = vld [vmem:[%s833 + $0x8] sm:$0xff]
        %v914 = vld [vmem:[%s833 + $0x10] sm:$0xff]
        %v915 = vld [vmem:[%s833 + $0x18] sm:$0xff]
        %v916 = vld [vmem:[%s836] sm:$0x1]
        %v918 = vlaneseq
        %v919 = vshrl.u32 %v918, 7
        %v920 = vsub.s32 0, %v919
        %v921 = vrot.slane %v916, %v920
        %v924 = vsel %vm883, %v911, 0
        %926 = vmatprep.subr.mxu0 0.0
        %927 = vmatpush1.msra.mxu0 %v912
        %928 = vmatprep.subr.mxu0 0.0
        %929 = vmatpush1.msra.mxu0 %v913
        %930 = vmatprep.subr.mxu0 0.0
        %931 = vmatpush1.msra.mxu0 %v914
        %932 = vmatprep.subr.mxu0 0.0
        %933 = vmatpush1.msra.mxu0 %v915
        %934 = vmatprep.subr.mxu0 0.0
        %935 = vmatpush1.msra.mxu0 0.0
        %936 = vmatprep.subr.mxu0 0.0
        %937 = vmatpush1.msra.mxu0 0.0
        %938 = vmatprep.subr.mxu0 0.0
        %939 = vmatpush1.msra.mxu0 0.0
        %940 = vmatprep.subr.mxu0 0.0
        %941 = vmatpush1.msra.mxu0 0.0
        %942 = vmatprep.subr.mxu0 0.0
        %943 = vmatpush1.msra.mxu0 0.0
        %944 = vmatprep.subr.mxu0 0.0
        %945 = vmatpush1.msra.mxu0 0.0
        %946 = vmatprep.subr.mxu0 0.0
        %947 = vmatpush1.msra.mxu0 0.0
        %948 = vmatprep.subr.mxu0 0.0
        %949 = vmatpush1.msra.mxu0 0.0
        %950 = vmatprep.subr.mxu0 0.0
        %951 = vmatpush1.msra.mxu0 0.0
        %952 = vmatprep.subr.mxu0 0.0
        %953 = vmatpush1.msra.mxu0 0.0
        %954 = vmatprep.subr.mxu0 0.0
        %955 = vmatpush1.msra.mxu0 0.0
        %956 = vmatprep.subr.mxu0 0.0
        %957 = vmatpush1.msra.mxu0 0.0
        %958 = vmatprep.subr.mxu0 0.0
        %959 = vmatpush1.msra.mxu0 0.0
        %960 = vmatprep.subr.mxu0 0.0
        %961 = vmatpush1.msra.mxu0 0.0
        %962 = vmatprep.subr.mxu0 0.0
        %963 = vmatpush1.msra.mxu0 0.0
        %964 = vmatprep.subr.mxu0 0.0
        %965 = vmatpush1.msra.mxu0 0.0
        %966 = vmatprep.subr.mxu0 0.0
        %967 = vmatpush1.msra.mxu0 0.0
        %968 = vmatprep.subr.mxu0 0.0
        %969 = vmatpush1.msra.mxu0 0.0
        %970 = vmatprep.subr.mxu0 0.0
        %971 = vmatpush1.msra.mxu0 0.0
        %972 = vmatprep.subr.mxu0 0.0
        %973 = vmatpush1.msra.mxu0 0.0
        %974 = vmatprep.subr.mxu0 0.0
        %975 = vmatpush1.msra.mxu0 0.0
        %976 = vmatprep.subr.mxu0 0.0
        %977 = vmatpush1.msra.mxu0 0.0
        %978 = vmatprep.subr.mxu0 0.0
        %979 = vmatpush1.msra.mxu0 0.0
        %980 = vmatprep.subr.mxu0 0.0
        %981 = vmatpush1.msra.mxu0 0.0
        %982 = vmatprep.subr.mxu0 0.0
        %983 = vmatpush1.msra.mxu0 0.0
        %984 = vmatprep.subr.mxu0 0.0
        %985 = vmatpush1.msra.mxu0 0.0
        %986 = vmatprep.subr.mxu0 0.0
        %987 = vmatpush1.msra.mxu0 0.0
        %988 = vmatprep.subr.mxu0 0.0
        %989 = vmatpush1.msra.mxu0 0.0
        %990 = vmatprep.mubr.f32.mxu0 0.0
        %991 = vmatmul.mubr.f32.gmra.mrb[0].mxu0 %v924
        %v992 = vpop.f32.mrb[0].mxu0
        %v993 = vadd.f32 %v921, %v992
        %v994 = vpop.f32.mrb[0].mxu0
        %995 = vdwg.mxu0
        %v996 = vld [vmem:[%s841] sm:$0xff]
        %v997 = vld [vmem:[%s841 + $0x8] sm:$0xff]
        %v998 = vld [vmem:[%s841 + $0x10] sm:$0xff]
        %v999 = vld [vmem:[%s841 + $0x18] sm:$0xff]
        %v1000 = vld [vmem:[%s844] sm:$0x1]
        %v1002 = vlaneseq
        %v1003 = vshrl.u32 %v1002, 7
        %v1004 = vsub.s32 0, %v1003
        %v1005 = vrot.slane %v1000, %v1004
        %1007 = vmatprep.subr.mxu0 0.0
        %1008 = vmatpush1.msra.mxu0 %v996
        %1009 = vmatprep.subr.mxu0 0.0
        %1010 = vmatpush1.msra.mxu0 %v997
        %1011 = vmatprep.subr.mxu0 0.0
        %1012 = vmatpush1.msra.mxu0 %v998
        %1013 = vmatprep.subr.mxu0 0.0
        %1014 = vmatpush1.msra.mxu0 %v999
        %1015 = vmatprep.subr.mxu0 0.0
        %1016 = vmatpush1.msra.mxu0 0.0
        %1017 = vmatprep.subr.mxu0 0.0
        %1018 = vmatpush1.msra.mxu0 0.0
        %1019 = vmatprep.subr.mxu0 0.0
        %1020 = vmatpush1.msra.mxu0 0.0
        %1021 = vmatprep.subr.mxu0 0.0
        %1022 = vmatpush1.msra.mxu0 0.0
        %1023 = vmatprep.subr.mxu0 0.0
        %1024 = vmatpush1.msra.mxu0 0.0
        %1025 = vmatprep.subr.mxu0 0.0
        %1026 = vmatpush1.msra.mxu0 0.0
        %1027 = vmatprep.subr.mxu0 0.0
        %1028 = vmatpush1.msra.mxu0 0.0
        %1029 = vmatprep.subr.mxu0 0.0
        %1030 = vmatpush1.msra.mxu0 0.0
        %1031 = vmatprep.subr.mxu0 0.0
        %1032 = vmatpush1.msra.mxu0 0.0
        %1033 = vmatprep.subr.mxu0 0.0
        %1034 = vmatpush1.msra.mxu0 0.0
        %1035 = vmatprep.subr.mxu0 0.0
        %1036 = vmatpush1.msra.mxu0 0.0
        %1037 = vmatprep.subr.mxu0 0.0
        %1038 = vmatpush1.msra.mxu0 0.0
        %1039 = vmatprep.subr.mxu0 0.0
        %1040 = vmatpush1.msra.mxu0 0.0
        %1041 = vmatprep.subr.mxu0 0.0
        %1042 = vmatpush1.msra.mxu0 0.0
        %1043 = vmatprep.subr.mxu0 0.0
        %1044 = vmatpush1.msra.mxu0 0.0
        %1045 = vmatprep.subr.mxu0 0.0
        %1046 = vmatpush1.msra.mxu0 0.0
        %1047 = vmatprep.subr.mxu0 0.0
        %1048 = vmatpush1.msra.mxu0 0.0
        %1049 = vmatprep.subr.mxu0 0.0
        %1050 = vmatpush1.msra.mxu0 0.0
        %1051 = vmatprep.subr.mxu0 0.0
        %1052 = vmatpush1.msra.mxu0 0.0
        %1053 = vmatprep.subr.mxu0 0.0
        %1054 = vmatpush1.msra.mxu0 0.0
        %1055 = vmatprep.subr.mxu0 0.0
        %1056 = vmatpush1.msra.mxu0 0.0
        %1057 = vmatprep.subr.mxu0 0.0
        %1058 = vmatpush1.msra.mxu0 0.0
        %1059 = vmatprep.subr.mxu0 0.0
        %1060 = vmatpush1.msra.mxu0 0.0
        %1061 = vmatprep.subr.mxu0 0.0
        %1062 = vmatpush1.msra.mxu0 0.0
        %1063 = vmatprep.subr.mxu0 0.0
        %1064 = vmatpush1.msra.mxu0 0.0
        %1065 = vmatprep.subr.mxu0 0.0
        %1066 = vmatpush1.msra.mxu0 0.0
        %1067 = vmatprep.subr.mxu0 0.0
        %1068 = vmatpush1.msra.mxu0 0.0
        %1069 = vmatprep.subr.mxu0 0.0
        %1070 = vmatpush1.msra.mxu0 0.0
        %1071 = vmatprep.mubr.f32.mxu0 0.0
        %1072 = vmatmul.mubr.f32.gmra.mrb[0].mxu0 %v924
        %v1073 = vpop.f32.mrb[0].mxu0
        %v1074 = vadd.f32 %v1005, %v1073
        %v1075 = vpop.f32.mrb[0].mxu0
        %1076 = vdwg.mxu0
        %v1077 = vld [vmem:[%s849] sm:$0xff]
        %v1078 = vld [vmem:[%s849 + $0x8] sm:$0xff]
        %v1079 = vld [vmem:[%s849 + $0x10] sm:$0xff]
        %v1080 = vld [vmem:[%s849 + $0x18] sm:$0xff]
        %v1081 = vld [vmem:[%s852] sm:$0x1]
        %v1083 = vlaneseq
        %v1084 = vshrl.u32 %v1083, 7
        %v1085 = vsub.s32 0, %v1084
        %v1086 = vrot.slane %v1081, %v1085
        %1088 = vmatprep.subr.mxu0 0.0
        %1089 = vmatpush1.msra.mxu0 %v1077
        %1090 = vmatprep.subr.mxu0 0.0
        %1091 = vmatpush1.msra.mxu0 %v1078
        %1092 = vmatprep.subr.mxu0 0.0
        %1093 = vmatpush1.msra.mxu0 %v1079
        %1094 = vmatprep.subr.mxu0 0.0
        %1095 = vmatpush1.msra.mxu0 %v1080
        %1096 = vmatprep.subr.mxu0 0.0
        %1097 = vmatpush1.msra.mxu0 0.0
        %1098 = vmatprep.subr.mxu0 0.0
        %1099 = vmatpush1.msra.mxu0 0.0
        %1100 = vmatprep.subr.mxu0 0.0
        %1101 = vmatpush1.msra.mxu0 0.0
        %1102 = vmatprep.subr.mxu0 0.0
        %1103 = vmatpush1.msra.mxu0 0.0
        %1104 = vmatprep.subr.mxu0 0.0
        %1105 = vmatpush1.msra.mxu0 0.0
        %1106 = vmatprep.subr.mxu0 0.0
        %1107 = vmatpush1.msra.mxu0 0.0
        %1108 = vmatprep.subr.mxu0 0.0
        %1109 = vmatpush1.msra.mxu0 0.0
        %1110 = vmatprep.subr.mxu0 0.0
        %1111 = vmatpush1.msra.mxu0 0.0
        %1112 = vmatprep.subr.mxu0 0.0
        %1113 = vmatpush1.msra.mxu0 0.0
        %1114 = vmatprep.subr.mxu0 0.0
        %1115 = vmatpush1.msra.mxu0 0.0
        %1116 = vmatprep.subr.mxu0 0.0
        %1117 = vmatpush1.msra.mxu0 0.0
        %1118 = vmatprep.subr.mxu0 0.0
        %1119 = vmatpush1.msra.mxu0 0.0
        %1120 = vmatprep.subr.mxu0 0.0
        %1121 = vmatpush1.msra.mxu0 0.0
        %1122 = vmatprep.subr.mxu0 0.0
        %1123 = vmatpush1.msra.mxu0 0.0
        %1124 = vmatprep.subr.mxu0 0.0
        %1125 = vmatpush1.msra.mxu0 0.0
        %1126 = vmatprep.subr.mxu0 0.0
        %1127 = vmatpush1.msra.mxu0 0.0
        %1128 = vmatprep.subr.mxu0 0.0
        %1129 = vmatpush1.msra.mxu0 0.0
        %1130 = vmatprep.subr.mxu0 0.0
        %1131 = vmatpush1.msra.mxu0 0.0
        %1132 = vmatprep.subr.mxu0 0.0
        %1133 = vmatpush1.msra.mxu0 0.0
        %1134 = vmatprep.subr.mxu0 0.0
        %1135 = vmatpush1.msra.mxu0 0.0
        %1136 = vmatprep.subr.mxu0 0.0
        %1137 = vmatpush1.msra.mxu0 0.0
        %1138 = vmatprep.subr.mxu0 0.0
        %1139 = vmatpush1.msra.mxu0 0.0
        %1140 = vmatprep.subr.mxu0 0.0
        %1141 = vmatpush1.msra.mxu0 0.0
        %1142 = vmatprep.subr.mxu0 0.0
        %1143 = vmatpush1.msra.mxu0 0.0
        %1144 = vmatprep.subr.mxu0 0.0
        %1145 = vmatpush1.msra.mxu0 0.0
        %1146 = vmatprep.subr.mxu0 0.0
        %1147 = vmatpush1.msra.mxu0 0.0
        %1148 = vmatprep.subr.mxu0 0.0
        %1149 = vmatpush1.msra.mxu0 0.0
        %1150 = vmatprep.subr.mxu0 0.0
        %1151 = vmatpush1.msra.mxu0 0.0
        %1152 = vmatprep.mubr.f32.mxu0 0.0
        %1153 = vmatmul.mubr.f32.gmra.mrb[0].mxu0 %v924
        %v1154 = vpop.f32.mrb[0].mxu0
        %v1155 = vadd.f32 %v1086, %v1154
        %v1156 = vpop.f32.mrb[0].mxu0
        %1157 = vdwg.mxu0
        %v1158 = vld [vmem:[%s703] sm:$0xff]
        %v1159 = vld [vmem:[%s703 + $0x8] sm:$0xff]
        %v1160 = vld [vmem:[%s703 + $0x10] sm:$0xff]
        %v1161 = vld [vmem:[%s703 + $0x18] sm:$0xff]
        %vm1162 = vcmask 64512
        %v1164 = vsel %vm1162, %v993, 0
        %v1167 = vsel %vm1162, %v1074, 0
        %1169 = vmatprep.subr.mxu0 0.0
        %1170 = vmatpush1.xpose.msra.mxu0 %v1167
        %1171 = vmatprep.subr.mxu0 0.0
        %1172 = vmatpush1.xpose.msra.mxu0 0.0
        %1173 = vmatprep.subr.mxu0 0.0
        %1174 = vmatpush1.xpose.msra.mxu0 0.0
        %1175 = vmatprep.subr.mxu0 0.0
        %1176 = vmatpush1.xpose.msra.mxu0 0.0
        %1177 = vmatprep.subr.mxu0 0.0
        %1178 = vmatpush1.xpose.msra.mxu0 0.0
        %1179 = vmatprep.subr.mxu0 0.0
        %1180 = vmatpush1.xpose.msra.mxu0 0.0
        %1181 = vmatprep.subr.mxu0 0.0
        %1182 = vmatpush1.xpose.msra.mxu0 0.0
        %1183 = vmatprep.subr.mxu0 0.0
        %1184 = vmatpush1.xpose.msra.mxu0 0.0
        %1185 = vmatprep.subr.mxu0 0.0
        %1186 = vmatpush1.xpose.msra.mxu0 0.0
        %1187 = vmatprep.subr.mxu0 0.0
        %1188 = vmatpush1.xpose.msra.mxu0 0.0
        %1189 = vmatprep.subr.mxu0 0.0
        %1190 = vmatpush1.xpose.msra.mxu0 0.0
        %1191 = vmatprep.subr.mxu0 0.0
        %1192 = vmatpush1.xpose.msra.mxu0 0.0
        %1193 = vmatprep.subr.mxu0 0.0
        %1194 = vmatpush1.xpose.msra.mxu0 0.0
        %1195 = vmatprep.subr.mxu0 0.0
        %1196 = vmatpush1.xpose.msra.mxu0 0.0
        %1197 = vmatprep.subr.mxu0 0.0
        %1198 = vmatpush1.xpose.msra.mxu0 0.0
        %1199 = vmatprep.subr.mxu0 0.0
        %1200 = vmatpush1.xpose.msra.mxu0 0.0
        %1201 = vmatprep.subr.mxu0 0.0
        %1202 = vmatpush1.xpose.msra.mxu0 0.0
        %1203 = vmatprep.subr.mxu0 0.0
        %1204 = vmatpush1.xpose.msra.mxu0 0.0
        %1205 = vmatprep.subr.mxu0 0.0
        %1206 = vmatpush1.xpose.msra.mxu0 0.0
        %1207 = vmatprep.subr.mxu0 0.0
        %1208 = vmatpush1.xpose.msra.mxu0 0.0
        %1209 = vmatprep.subr.mxu0 0.0
        %1210 = vmatpush1.xpose.msra.mxu0 0.0
        %1211 = vmatprep.subr.mxu0 0.0
        %1212 = vmatpush1.xpose.msra.mxu0 0.0
        %1213 = vmatprep.subr.mxu0 0.0
        %1214 = vmatpush1.xpose.msra.mxu0 0.0
        %1215 = vmatprep.subr.mxu0 0.0
        %1216 = vmatpush1.xpose.msra.mxu0 0.0
        %1217 = vmatprep.subr.mxu0 0.0
        %1218 = vmatpush1.xpose.msra.mxu0 0.0
        %1219 = vmatprep.subr.mxu0 0.0
        %1220 = vmatpush1.xpose.msra.mxu0 0.0
        %1221 = vmatprep.subr.mxu0 0.0
        %1222 = vmatpush1.xpose.msra.mxu0 0.0
        %1223 = vmatprep.subr.mxu0 0.0
        %1224 = vmatpush1.xpose.msra.mxu0 0.0
        %1225 = vmatprep.subr.mxu0 0.0
        %1226 = vmatpush1.xpose.msra.mxu0 0.0
        %1227 = vmatprep.subr.mxu0 0.0
        %1228 = vmatpush1.xpose.msra.mxu0 0.0
        %1229 = vmatprep.subr.mxu0 0.0
        %1230 = vmatpush1.xpose.msra.mxu0 0.0
        %1231 = vmatprep.subr.mxu0 0.0
        %1232 = vmatpush1.xpose.msra.mxu0 0.0
        %1233 = vmatprep.mubr.f32.mxu0 0.0
        %1234 = vmatmul.mubr.f32.gmra.mrb[0].mxu0 %v1164
        %v1235 = vpop.f32.mrb[0].mxu0
        %v1236 = vadd.f32 0.0, %v1235
        %v1237 = vpop.f32.mrb[0].mxu0
        %1238 = vdwg.mxu0
        %v1239 = vsel %vm1162, %v1236, -inf
        %1240 = vmax.xlane.f32.xlu0 %v1239
        %v1241 = vpop.xlane.xlu0 %1240
        %v1242 = vsub.f32 %v1236, %v1241
        %v1243 = vmul.f32 %v1242, 1.442695
        %v1244 = vpow.pop %v1243
        %v1245 = vsel %vm1162, %v1244, 0.0
        %1246 = vadd.xlane.f32.xlu0 %v1245
        %v1247 = vpop.xlane.xlu0 %1246
        %v1248 = vrcp.pop %v1247
        %v1249 = vmul.f32 %v1244, %v1248
        %v1251 = vsel %vm1162, %v1249, 0
        %1253 = vmatprep.subr.mxu0 0.0
        %1254 = vmatpush1.msra.mxu0 %v1155
        %1255 = vmatprep.subr.mxu0 0.0
        %1256 = vmatpush1.msra.mxu0 0.0
        %1257 = vmatprep.subr.mxu0 0.0
        %1258 = vmatpush1.msra.mxu0 0.0
        %1259 = vmatprep.subr.mxu0 0.0
        %1260 = vmatpush1.msra.mxu0 0.0
        %1261 = vmatprep.subr.mxu0 0.0
        %1262 = vmatpush1.msra.mxu0 0.0
        %1263 = vmatprep.subr.mxu0 0.0
        %1264 = vmatpush1.msra.mxu0 0.0
        %1265 = vmatprep.subr.mxu0 0.0
        %1266 = vmatpush1.msra.mxu0 0.0
        %1267 = vmatprep.subr.mxu0 0.0
        %1268 = vmatpush1.msra.mxu0 0.0
        %1269 = vmatprep.subr.mxu0 0.0
        %1270 = vmatpush1.msra.mxu0 0.0
        %1271 = vmatprep.subr.mxu0 0.0
        %1272 = vmatpush1.msra.mxu0 0.0
        %1273 = vmatprep.subr.mxu0 0.0
        %1274 = vmatpush1.msra.mxu0 0.0
        %1275 = vmatprep.subr.mxu0 0.0
        %1276 = vmatpush1.msra.mxu0 0.0
        %1277 = vmatprep.subr.mxu0 0.0
        %1278 = vmatpush1.msra.mxu0 0.0
        %1279 = vmatprep.subr.mxu0 0.0
        %1280 = vmatpush1.msra.mxu0 0.0
        %1281 = vmatprep.subr.mxu0 0.0
        %1282 = vmatpush1.msra.mxu0 0.0
        %1283 = vmatprep.subr.mxu0 0.0
        %1284 = vmatpush1.msra.mxu0 0.0
        %1285 = vmatprep.subr.mxu0 0.0
        %1286 = vmatpush1.msra.mxu0 0.0
        %1287 = vmatprep.subr.mxu0 0.0
        %1288 = vmatpush1.msra.mxu0 0.0
        %1289 = vmatprep.subr.mxu0 0.0
        %1290 = vmatpush1.msra.mxu0 0.0
        %1291 = vmatprep.subr.mxu0 0.0
        %1292 = vmatpush1.msra.mxu0 0.0
        %1293 = vmatprep.subr.mxu0 0.0
        %1294 = vmatpush1.msra.mxu0 0.0
        %1295 = vmatprep.subr.mxu0 0.0
        %1296 = vmatpush1.msra.mxu0 0.0
        %1297 = vmatprep.subr.mxu0 0.0
        %1298 = vmatpush1.msra.mxu0 0.0
        %1299 = vmatprep.subr.mxu0 0.0
        %1300 = vmatpush1.msra.mxu0 0.0
        %1301 = vmatprep.subr.mxu0 0.0
        %1302 = vmatpush1.msra.mxu0 0.0
        %1303 = vmatprep.subr.mxu0 0.0
        %1304 = vmatpush1.msra.mxu0 0.0
        %1305 = vmatprep.subr.mxu0 0.0
        %1306 = vmatpush1.msra.mxu0 0.0
        %1307 = vmatprep.subr.mxu0 0.0
        %1308 = vmatpush1.msra.mxu0 0.0
        %1309 = vmatprep.subr.mxu0 0.0
        %1310 = vmatpush1.msra.mxu0 0.0
        %1311 = vmatprep.subr.mxu0 0.0
        %1312 = vmatpush1.msra.mxu0 0.0
        %1313 = vmatprep.subr.mxu0 0.0
        %1314 = vmatpush1.msra.mxu0 0.0
        %1315 = vmatprep.subr.mxu0 0.0
        %1316 = vmatpush1.msra.mxu0 0.0
        %1317 = vmatprep.mubr.f32.mxu0 0.0
        %1318 = vmatmul.mubr.f32.gmra.mrb[0].mxu0 %v1251
        %v1319 = vpop.f32.mrb[0].mxu0
        %v1320 = vadd.f32 0.0, %v1319
        %v1321 = vpop.f32.mrb[0].mxu0
        %1322 = vdwg.mxu0
        %1323 = vrot.lane.b32.xlu0 %v993, 120
        %v1324 = vpop.permute.xlu0 %1323
        %1325 = vrot.lane.b32.xlu0 %v1074, 120
        %v1326 = vpop.permute.xlu0 %1325
        %v1327 = vsel %vm1162, %v1324, 0
        %v1329 = vsel %vm1162, %v1326, 0
        %1331 = vmatprep.subr.mxu0 0.0
        %1332 = vmatpush1.xpose.msra.mxu0 %v1329
        %1333 = vmatprep.subr.mxu0 0.0
        %1334 = vmatpush1.xpose.msra.mxu0 0.0
        %1335 = vmatprep.subr.mxu0 0.0
        %1336 = vmatpush1.xpose.msra.mxu0 0.0
        %1337 = vmatprep.subr.mxu0 0.0
        %1338 = vmatpush1.xpose.msra.mxu0 0.0
        %1339 = vmatprep.subr.mxu0 0.0
        %1340 = vmatpush1.xpose.msra.mxu0 0.0
        %1341 = vmatprep.subr.mxu0 0.0
        %1342 = vmatpush1.xpose.msra.mxu0 0.0
        %1343 = vmatprep.subr.mxu0 0.0
        %1344 = vmatpush1.xpose.msra.mxu0 0.0
        %1345 = vmatprep.subr.mxu0 0.0
        %1346 = vmatpush1.xpose.msra.mxu0 0.0
        %1347 = vmatprep.subr.mxu0 0.0
        %1348 = vmatpush1.xpose.msra.mxu0 0.0
        %1349 = vmatprep.subr.mxu0 0.0
        %1350 = vmatpush1.xpose.msra.mxu0 0.0
        %1351 = vmatprep.subr.mxu0 0.0
        %1352 = vmatpush1.xpose.msra.mxu0 0.0
        %1353 = vmatprep.subr.mxu0 0.0
        %1354 = vmatpush1.xpose.msra.mxu0 0.0
        %1355 = vmatprep.subr.mxu0 0.0
        %1356 = vmatpush1.xpose.msra.mxu0 0.0
        %1357 = vmatprep.subr.mxu0 0.0
        %1358 = vmatpush1.xpose.msra.mxu0 0.0
        %1359 = vmatprep.subr.mxu0 0.0
        %1360 = vmatpush1.xpose.msra.mxu0 0.0
        %1361 = vmatprep.subr.mxu0 0.0
        %1362 = vmatpush1.xpose.msra.mxu0 0.0
        %1363 = vmatprep.subr.mxu0 0.0
        %1364 = vmatpush1.xpose.msra.mxu0 0.0
        %1365 = vmatprep.subr.mxu0 0.0
        %1366 = vmatpush1.xpose.msra.mxu0 0.0
        %1367 = vmatprep.subr.mxu0 0.0
        %1368 = vmatpush1.xpose.msra.mxu0 0.0
        %1369 = vmatprep.subr.mxu0 0.0
        %1370 = vmatpush1.xpose.msra.mxu0 0.0
        %1371 = vmatprep.subr.mxu0 0.0
        %1372 = vmatpush1.xpose.msra.mxu0 0.0
        %1373 = vmatprep.subr.mxu0 0.0
        %1374 = vmatpush1.xpose.msra.mxu0 0.0
        %1375 = vmatprep.subr.mxu0 0.0
        %1376 = vmatpush1.xpose.msra.mxu0 0.0
        %1377 = vmatprep.subr.mxu0 0.0
        %1378 = vmatpush1.xpose.msra.mxu0 0.0
        %1379 = vmatprep.subr.mxu0 0.0
        %1380 = vmatpush1.xpose.msra.mxu0 0.0
        %1381 = vmatprep.subr.mxu0 0.0
        %1382 = vmatpush1.xpose.msra.mxu0 0.0
        %1383 = vmatprep.subr.mxu0 0.0
        %1384 = vmatpush1.xpose.msra.mxu0 0.0
        %1385 = vmatprep.subr.mxu0 0.0
        %1386 = vmatpush1.xpose.msra.mxu0 0.0
        %1387 = vmatprep.subr.mxu0 0.0
        %1388 = vmatpush1.xpose.msra.mxu0 0.0
        %1389 = vmatprep.subr.mxu0 0.0
        %1390 = vmatpush1.xpose.msra.mxu0 0.0
        %1391 = vmatprep.subr.mxu0 0.0
        %1392 = vmatpush1.xpose.msra.mxu0 0.0
        %1393 = vmatprep.subr.mxu0 0.0
        %1394 = vmatpush1.xpose.msra.mxu0 0.0
        %1395 = vmatprep.mubr.f32.mxu0 0.0
        %1396 = vmatmul.mubr.f32.gmra.mrb[0].mxu0 %v1327
        %v1397 = vpop.f32.mrb[0].mxu0
        %v1398 = vadd.f32 0.0, %v1397
        %v1399 = vpop.f32.mrb[0].mxu0
        %1400 = vdwg.mxu0
        %v1401 = vsel %vm1162, %v1398, -inf
        %1402 = vmax.xlane.f32.xlu0 %v1401
        %v1403 = vpop.xlane.xlu0 %1402
        %v1404 = vsub.f32 %v1398, %v1403
        %v1405 = vmul.f32 %v1404, 1.442695
        %v1406 = vpow.pop %v1405
        %v1407 = vsel %vm1162, %v1406, 0.0
        %1408 = vadd.xlane.f32.xlu0 %v1407
        %v1409 = vpop.xlane.xlu0 %1408
        %v1410 = vrcp.pop %v1409
        %v1411 = vmul.f32 %v1406, %v1410
        %1413 = vrot.lane.b32.xlu0 %v1155, 120
        %v1414 = vpop.permute.xlu0 %1413
        %v1417 = vsel %vm1162, %v1411, 0
        %1419 = vmatprep.subr.mxu0 0.0
        %1420 = vmatpush1.msra.mxu0 %v1414
        %1421 = vmatprep.subr.mxu0 0.0
        %1422 = vmatpush1.msra.mxu0 0.0
        %1423 = vmatprep.subr.mxu0 0.0
        %1424 = vmatpush1.msra.mxu0 0.0
        %1425 = vmatprep.subr.mxu0 0.0
        %1426 = vmatpush1.msra.mxu0 0.0
        %1427 = vmatprep.subr.mxu0 0.0
        %1428 = vmatpush1.msra.mxu0 0.0
        %1429 = vmatprep.subr.mxu0 0.0
        %1430 = vmatpush1.msra.mxu0 0.0
        %1431 = vmatprep.subr.mxu0 0.0
        %1432 = vmatpush1.msra.mxu0 0.0
        %1433 = vmatprep.subr.mxu0 0.0
        %1434 = vmatpush1.msra.mxu0 0.0
        %1435 = vmatprep.subr.mxu0 0.0
        %1436 = vmatpush1.msra.mxu0 0.0
        %1437 = vmatprep.subr.mxu0 0.0
        %1438 = vmatpush1.msra.mxu0 0.0
        %1439 = vmatprep.subr.mxu0 0.0
        %1440 = vmatpush1.msra.mxu0 0.0
        %1441 = vmatprep.subr.mxu0 0.0
        %1442 = vmatpush1.msra.mxu0 0.0
        %1443 = vmatprep.subr.mxu0 0.0
        %1444 = vmatpush1.msra.mxu0 0.0
        %1445 = vmatprep.subr.mxu0 0.0
        %1446 = vmatpush1.msra.mxu0 0.0
        %1447 = vmatprep.subr.mxu0 0.0
        %1448 = vmatpush1.msra.mxu0 0.0
        %1449 = vmatprep.subr.mxu0 0.0
        %1450 = vmatpush1.msra.mxu0 0.0
        %1451 = vmatprep.subr.mxu0 0.0
        %1452 = vmatpush1.msra.mxu0 0.0
        %1453 = vmatprep.subr.mxu0 0.0
        %1454 = vmatpush1.msra.mxu0 0.0
        %1455 = vmatprep.subr.mxu0 0.0
        %1456 = vmatpush1.msra.mxu0 0.0
        %1457 = vmatprep.subr.mxu0 0.0
        %1458 = vmatpush1.msra.mxu0 0.0
        %1459 = vmatprep.subr.mxu0 0.0
        %1460 = vmatpush1.msra.mxu0 0.0
        %1461 = vmatprep.subr.mxu0 0.0
        %1462 = vmatpush1.msra.mxu0 0.0
        %1463 = vmatprep.subr.mxu0 0.0
        %1464 = vmatpush1.msra.mxu0 0.0
        %1465 = vmatprep.subr.mxu0 0.0
        %1466 = vmatpush1.msra.mxu0 0.0
        %1467 = vmatprep.subr.mxu0 0.0
        %1468 = vmatpush1.msra.mxu0 0.0
        %1469 = vmatprep.subr.mxu0 0.0
        %1470 = vmatpush1.msra.mxu0 0.0
        %1471 = vmatprep.subr.mxu0 0.0
        %1472 = vmatpush1.msra.mxu0 0.0
        %1473 = vmatprep.subr.mxu0 0.0
        %1474 = vmatpush1.msra.mxu0 0.0
        %1475 = vmatprep.subr.mxu0 0.0
        %1476 = vmatpush1.msra.mxu0 0.0
        %1477 = vmatprep.subr.mxu0 0.0
        %1478 = vmatpush1.msra.mxu0 0.0
        %1479 = vmatprep.subr.mxu0 0.0
        %1480 = vmatpush1.msra.mxu0 0.0
        %1481 = vmatprep.subr.mxu0 0.0
        %1482 = vmatpush1.msra.mxu0 0.0
        %1483 = vmatprep.mubr.f32.mxu0 0.0
        %1484 = vmatmul.mubr.f32.gmra.mrb[0].mxu0 %v1417
        %v1485 = vpop.f32.mrb[0].mxu0
        %v1486 = vadd.f32 0.0, %v1485
        %v1487 = vpop.f32.mrb[0].mxu0
        %1488 = vdwg.mxu0
        %v1490 = vsel %vm1162, %v1486, 0
        %1492 = vmatprep.subr.mxu0 0.0
        %1493 = vmatpush1.msra.mxu0 %v1159
        %1494 = vmatprep.subr.mxu0 0.0
        %1495 = vmatpush1.msra.mxu0 0.0
        %1496 = vmatprep.subr.mxu0 0.0
        %1497 = vmatpush1.msra.mxu0 0.0
        %1498 = vmatprep.subr.mxu0 0.0
        %1499 = vmatpush1.msra.mxu0 0.0
        %1500 = vmatprep.subr.mxu0 0.0
        %1501 = vmatpush1.msra.mxu0 0.0
        %1502 = vmatprep.subr.mxu0 0.0
        %1503 = vmatpush1.msra.mxu0 0.0
        %1504 = vmatprep.subr.mxu0 0.0
        %1505 = vmatpush1.msra.mxu0 0.0
        %1506 = vmatprep.subr.mxu0 0.0
        %1507 = vmatpush1.msra.mxu0 0.0
        %1508 = vmatprep.subr.mxu0 0.0
        %1509 = vmatpush1.msra.mxu0 0.0
        %1510 = vmatprep.subr.mxu0 0.0
        %1511 = vmatpush1.msra.mxu0 0.0
        %1512 = vmatprep.subr.mxu0 0.0
        %1513 = vmatpush1.msra.mxu0 0.0
        %1514 = vmatprep.subr.mxu0 0.0
        %1515 = vmatpush1.msra.mxu0 0.0
        %1516 = vmatprep.subr.mxu0 0.0
        %1517 = vmatpush1.msra.mxu0 0.0
        %1518 = vmatprep.subr.mxu0 0.0
        %1519 = vmatpush1.msra.mxu0 0.0
        %1520 = vmatprep.subr.mxu0 0.0
        %1521 = vmatpush1.msra.mxu0 0.0
        %1522 = vmatprep.subr.mxu0 0.0
        %1523 = vmatpush1.msra.mxu0 0.0
        %1524 = vmatprep.subr.mxu0 0.0
        %1525 = vmatpush1.msra.mxu0 0.0
        %1526 = vmatprep.subr.mxu0 0.0
        %1527 = vmatpush1.msra.mxu0 0.0
        %1528 = vmatprep.subr.mxu0 0.0
        %1529 = vmatpush1.msra.mxu0 0.0
        %1530 = vmatprep.subr.mxu0 0.0
        %1531 = vmatpush1.msra.mxu0 0.0
        %1532 = vmatprep.subr.mxu0 0.0
        %1533 = vmatpush1.msra.mxu0 0.0
        %1534 = vmatprep.subr.mxu0 0.0
        %1535 = vmatpush1.msra.mxu0 0.0
        %1536 = vmatprep.subr.mxu0 0.0
        %1537 = vmatpush1.msra.mxu0 0.0
        %1538 = vmatprep.subr.mxu0 0.0
        %1539 = vmatpush1.msra.mxu0 0.0
        %1540 = vmatprep.subr.mxu0 0.0
        %1541 = vmatpush1.msra.mxu0 0.0
        %1542 = vmatprep.subr.mxu0 0.0
        %1543 = vmatpush1.msra.mxu0 0.0
        %1544 = vmatprep.subr.mxu0 0.0
        %1545 = vmatpush1.msra.mxu0 0.0
        %1546 = vmatprep.subr.mxu0 0.0
        %1547 = vmatpush1.msra.mxu0 0.0
        %1548 = vmatprep.subr.mxu0 0.0
        %1549 = vmatpush1.msra.mxu0 0.0
        %1550 = vmatprep.subr.mxu0 0.0
        %1551 = vmatpush1.msra.mxu0 0.0
        %1552 = vmatprep.subr.mxu0 0.0
        %1553 = vmatpush1.msra.mxu0 0.0
        %1554 = vmatprep.subr.mxu0 0.0
        %1555 = vmatpush1.msra.mxu0 0.0
        %1556 = vmatprep.mubr.f32.mxu0 0.0
        %1557 = vmatmul.mubr.f32.gmra.mrb[0].mxu0 %v1490
        %v1558 = vpop.f32.mrb[0].mxu0
        %v1559 = vadd.f32 0.0, %v1558
        %v1560 = vpop.f32.mrb[0].mxu0
        %1561 = vdwg.mxu0
        %v1563 = vsel %vm1162, %v1320, 0
        %1565 = vmatprep.subr.mxu0 0.0
        %1566 = vmatpush1.msra.mxu0 %v1158
        %1567 = vmatprep.subr.mxu0 0.0
        %1568 = vmatpush1.msra.mxu0 0.0
        %1569 = vmatprep.subr.mxu0 0.0
        %1570 = vmatpush1.msra.mxu0 0.0
        %1571 = vmatprep.subr.mxu0 0.0
        %1572 = vmatpush1.msra.mxu0 0.0
        %1573 = vmatprep.subr.mxu0 0.0
        %1574 = vmatpush1.msra.mxu0 0.0
        %1575 = vmatprep.subr.mxu0 0.0
        %1576 = vmatpush1.msra.mxu0 0.0
        %1577 = vmatprep.subr.mxu0 0.0
        %1578 = vmatpush1.msra.mxu0 0.0
        %1579 = vmatprep.subr.mxu0 0.0
        %1580 = vmatpush1.msra.mxu0 0.0
        %1581 = vmatprep.subr.mxu0 0.0
        %1582 = vmatpush1.msra.mxu0 0.0
        %1583 = vmatprep.subr.mxu0 0.0
        %1584 = vmatpush1.msra.mxu0 0.0
        %1585 = vmatprep.subr.mxu0 0.0
        %1586 = vmatpush1.msra.mxu0 0.0
        %1587 = vmatprep.subr.mxu0 0.0
        %1588 = vmatpush1.msra.mxu0 0.0
        %1589 = vmatprep.subr.mxu0 0.0
        %1590 = vmatpush1.msra.mxu0 0.0
        %1591 = vmatprep.subr.mxu0 0.0
        %1592 = vmatpush1.msra.mxu0 0.0
        %1593 = vmatprep.subr.mxu0 0.0
        %1594 = vmatpush1.msra.mxu0 0.0
        %1595 = vmatprep.subr.mxu0 0.0
        %1596 = vmatpush1.msra.mxu0 0.0
        %1597 = vmatprep.subr.mxu0 0.0
        %1598 = vmatpush1.msra.mxu0 0.0
        %1599 = vmatprep.subr.mxu0 0.0
        %1600 = vmatpush1.msra.mxu0 0.0
        %1601 = vmatprep.subr.mxu0 0.0
        %1602 = vmatpush1.msra.mxu0 0.0
        %1603 = vmatprep.subr.mxu0 0.0
        %1604 = vmatpush1.msra.mxu0 0.0
        %1605 = vmatprep.subr.mxu0 0.0
        %1606 = vmatpush1.msra.mxu0 0.0
        %1607 = vmatprep.subr.mxu0 0.0
        %1608 = vmatpush1.msra.mxu0 0.0
        %1609 = vmatprep.subr.mxu0 0.0
        %1610 = vmatpush1.msra.mxu0 0.0
        %1611 = vmatprep.subr.mxu0 0.0
        %1612 = vmatpush1.msra.mxu0 0.0
        %1613 = vmatprep.subr.mxu0 0.0
        %1614 = vmatpush1.msra.mxu0 0.0
        %1615 = vmatprep.subr.mxu0 0.0
        %1616 = vmatpush1.msra.mxu0 0.0
        %1617 = vmatprep.subr.mxu0 0.0
        %1618 = vmatpush1.msra.mxu0 0.0
        %1619 = vmatprep.subr.mxu0 0.0
        %1620 = vmatpush1.msra.mxu0 0.0
        %1621 = vmatprep.subr.mxu0 0.0
        %1622 = vmatpush1.msra.mxu0 0.0
        %1623 = vmatprep.subr.mxu0 0.0
        %1624 = vmatpush1.msra.mxu0 0.0
        %1625 = vmatprep.subr.mxu0 0.0
        %1626 = vmatpush1.msra.mxu0 0.0
        %1627 = vmatprep.subr.mxu0 0.0
        %1628 = vmatpush1.msra.mxu0 0.0
        %1629 = vmatprep.mubr.f32.mxu0 0.0
        %1630 = vmatmul.mubr.f32.gmra.mrb[0].mxu0 %v1563
        %v1631 = vpop.f32.mrb[0].mxu0
        %v1632 = vadd.f32 %v1559, %v1631
        %v1633 = vpop.f32.mrb[0].mxu0
        %1634 = vdwg.mxu0
        %1635 = vrot.lane.b32.xlu0 %v993, 112
        %v1636 = vpop.permute.xlu0 %1635
        %1637 = vrot.lane.b32.xlu0 %v1074, 112
        %v1638 = vpop.permute.xlu0 %1637
        %v1639 = vsel %vm1162, %v1636, 0
        %v1641 = vsel %vm1162, %v1638, 0
        %1643 = vmatprep.subr.mxu0 0.0
        %1644 = vmatpush1.xpose.msra.mxu0 %v1641
        %1645 = vmatprep.subr.mxu0 0.0
        %1646 = vmatpush1.xpose.msra.mxu0 0.0
        %1647 = vmatprep.subr.mxu0 0.0
        %1648 = vmatpush1.xpose.msra.mxu0 0.0
        %1649 = vmatprep.subr.mxu0 0.0
        %1650 = vmatpush1.xpose.msra.mxu0 0.0
        %1651 = vmatprep.subr.mxu0 0.0
        %1652 = vmatpush1.xpose.msra.mxu0 0.0
        %1653 = vmatprep.subr.mxu0 0.0
        %1654 = vmatpush1.xpose.msra.mxu0 0.0
        %1655 = vmatprep.subr.mxu0 0.0
        %1656 = vmatpush1.xpose.msra.mxu0 0.0
        %1657 = vmatprep.subr.mxu0 0.0
        %1658 = vmatpush1.xpose.msra.mxu0 0.0
        %1659 = vmatprep.subr.mxu0 0.0
        %1660 = vmatpush1.xpose.msra.mxu0 0.0
        %1661 = vmatprep.subr.mxu0 0.0
        %1662 = vmatpush1.xpose.msra.mxu0 0.0
        %1663 = vmatprep.subr.mxu0 0.0
        %1664 = vmatpush1.xpose.msra.mxu0 0.0
        %1665 = vmatprep.subr.mxu0 0.0
        %1666 = vmatpush1.xpose.msra.mxu0 0.0
        %1667 = vmatprep.subr.mxu0 0.0
        %1668 = vmatpush1.xpose.msra.mxu0 0.0
        %1669 = vmatprep.subr.mxu0 0.0
        %1670 = vmatpush1.xpose.msra.mxu0 0.0
        %1671 = vmatprep.subr.mxu0 0.0
        %1672 = vmatpush1.xpose.msra.mxu0 0.0
        %1673 = vmatprep.subr.mxu0 0.0
        %1674 = vmatpush1.xpose.msra.mxu0 0.0
        %1675 = vmatprep.subr.mxu0 0.0
        %1676 = vmatpush1.xpose.msra.mxu0 0.0
        %1677 = vmatprep.subr.mxu0 0.0
        %1678 = vmatpush1.xpose.msra.mxu0 0.0
        %1679 = vmatprep.subr.mxu0 0.0
        %1680 = vmatpush1.xpose.msra.mxu0 0.0
        %1681 = vmatprep.subr.mxu0 0.0
        %1682 = vmatpush1.xpose.msra.mxu0 0.0
        %1683 = vmatprep.subr.mxu0 0.0
        %1684 = vmatpush1.xpose.msra.mxu0 0.0
        %1685 = vmatprep.subr.mxu0 0.0
        %1686 = vmatpush1.xpose.msra.mxu0 0.0
        %1687 = vmatprep.subr.mxu0 0.0
        %1688 = vmatpush1.xpose.msra.mxu0 0.0
        %1689 = vmatprep.subr.mxu0 0.0
        %1690 = vmatpush1.xpose.msra.mxu0 0.0
        %1691 = vmatprep.subr.mxu0 0.0
        %1692 = vmatpush1.xpose.msra.mxu0 0.0
        %1693 = vmatprep.subr.mxu0 0.0
        %1694 = vmatpush1.xpose.msra.mxu0 0.0
        %1695 = vmatprep.subr.mxu0 0.0
        %1696 = vmatpush1.xpose.msra.mxu0 0.0
        %1697 = vmatprep.subr.mxu0 0.0
        %1698 = vmatpush1.xpose.msra.mxu0 0.0
        %1699 = vmatprep.subr.mxu0 0.0
        %1700 = vmatpush1.xpose.msra.mxu0 0.0
        %1701 = vmatprep.subr.mxu0 0.0
        %1702 = vmatpush1.xpose.msra.mxu0 0.0
        %1703 = vmatprep.subr.mxu0 0.0
        %1704 = vmatpush1.xpose.msra.mxu0 0.0
        %1705 = vmatprep.subr.mxu0 0.0
        %1706 = vmatpush1.xpose.msra.mxu0 0.0
        %1707 = vmatprep.mubr.f32.mxu0 0.0
        %1708 = vmatmul.mubr.f32.gmra.mrb[0].mxu0 %v1639
        %v1709 = vpop.f32.mrb[0].mxu0
        %v1710 = vadd.f32 0.0, %v1709
        %v1711 = vpop.f32.mrb[0].mxu0
        %1712 = vdwg.mxu0
        %v1713 = vsel %vm1162, %v1710, -inf
        %1714 = vmax.xlane.f32.xlu0 %v1713
        %v1715 = vpop.xlane.xlu0 %1714
        %v1716 = vsub.f32 %v1710, %v1715
        %v1717 = vmul.f32 %v1716, 1.442695
        %v1718 = vpow.pop %v1717
        %v1719 = vsel %vm1162, %v1718, 0.0
        %1720 = vadd.xlane.f32.xlu0 %v1719
        %v1721 = vpop.xlane.xlu0 %1720
        %v1722 = vrcp.pop %v1721
        %v1723 = vmul.f32 %v1718, %v1722
        %1724 = vrot.lane.b32.xlu0 %v1155, 112
        %v1725 = vpop.permute.xlu0 %1724
        %v1728 = vsel %vm1162, %v1723, 0
        %1730 = vmatprep.subr.mxu0 0.0
        %1731 = vmatpush1.msra.mxu0 %v1725
        %1732 = vmatprep.subr.mxu0 0.0
        %1733 = vmatpush1.msra.mxu0 0.0
        %1734 = vmatprep.subr.mxu0 0.0
        %1735 = vmatpush1.msra.mxu0 0.0
        %1736 = vmatprep.subr.mxu0 0.0
        %1737 = vmatpush1.msra.mxu0 0.0
        %1738 = vmatprep.subr.mxu0 0.0
        %1739 = vmatpush1.msra.mxu0 0.0
        %1740 = vmatprep.subr.mxu0 0.0
        %1741 = vmatpush1.msra.mxu0 0.0
        %1742 = vmatprep.subr.mxu0 0.0
        %1743 = vmatpush1.msra.mxu0 0.0
        %1744 = vmatprep.subr.mxu0 0.0
        %1745 = vmatpush1.msra.mxu0 0.0
        %1746 = vmatprep.subr.mxu0 0.0
        %1747 = vmatpush1.msra.mxu0 0.0
        %1748 = vmatprep.subr.mxu0 0.0
        %1749 = vmatpush1.msra.mxu0 0.0
        %1750 = vmatprep.subr.mxu0 0.0
        %1751 = vmatpush1.msra.mxu0 0.0
        %1752 = vmatprep.subr.mxu0 0.0
        %1753 = vmatpush1.msra.mxu0 0.0
        %1754 = vmatprep.subr.mxu0 0.0
        %1755 = vmatpush1.msra.mxu0 0.0
        %1756 = vmatprep.subr.mxu0 0.0
        %1757 = vmatpush1.msra.mxu0 0.0
        %1758 = vmatprep.subr.mxu0 0.0
        %1759 = vmatpush1.msra.mxu0 0.0
        %1760 = vmatprep.subr.mxu0 0.0
        %1761 = vmatpush1.msra.mxu0 0.0
        %1762 = vmatprep.subr.mxu0 0.0
        %1763 = vmatpush1.msra.mxu0 0.0
        %1764 = vmatprep.subr.mxu0 0.0
        %1765 = vmatpush1.msra.mxu0 0.0
        %1766 = vmatprep.subr.mxu0 0.0
        %1767 = vmatpush1.msra.mxu0 0.0
        %1768 = vmatprep.subr.mxu0 0.0
        %1769 = vmatpush1.msra.mxu0 0.0
        %1770 = vmatprep.subr.mxu0 0.0
        %1771 = vmatpush1.msra.mxu0 0.0
        %1772 = vmatprep.subr.mxu0 0.0
        %1773 = vmatpush1.msra.mxu0 0.0
        %1774 = vmatprep.subr.mxu0 0.0
        %1775 = vmatpush1.msra.mxu0 0.0
        %1776 = vmatprep.subr.mxu0 0.0
        %1777 = vmatpush1.msra.mxu0 0.0
        %1778 = vmatprep.subr.mxu0 0.0
        %1779 = vmatpush1.msra.mxu0 0.0
        %1780 = vmatprep.subr.mxu0 0.0
        %1781 = vmatpush1.msra.mxu0 0.0
        %1782 = vmatprep.subr.mxu0 0.0
        %1783 = vmatpush1.msra.mxu0 0.0
        %1784 = vmatprep.subr.mxu0 0.0
        %1785 = vmatpush1.msra.mxu0 0.0
        %1786 = vmatprep.subr.mxu0 0.0
        %1787 = vmatpush1.msra.mxu0 0.0
        %1788 = vmatprep.subr.mxu0 0.0
        %1789 = vmatpush1.msra.mxu0 0.0
        %1790 = vmatprep.subr.mxu0 0.0
        %1791 = vmatpush1.msra.mxu0 0.0
        %1792 = vmatprep.subr.mxu0 0.0
        %1793 = vmatpush1.msra.mxu0 0.0
        %1794 = vmatprep.mubr.f32.mxu0 0.0
        %1795 = vmatmul.mubr.f32.gmra.mrb[0].mxu0 %v1728
        %v1796 = vpop.f32.mrb[0].mxu0
        %v1797 = vadd.f32 0.0, %v1796
        %v1798 = vpop.f32.mrb[0].mxu0
        %1799 = vdwg.mxu0
        %v1801 = vsel %vm1162, %v1797, 0
        %1803 = vmatprep.subr.mxu0 0.0
        %1804 = vmatpush1.msra.mxu0 %v1160
        %1805 = vmatprep.subr.mxu0 0.0
        %1806 = vmatpush1.msra.mxu0 0.0
        %1807 = vmatprep.subr.mxu0 0.0
        %1808 = vmatpush1.msra.mxu0 0.0
        %1809 = vmatprep.subr.mxu0 0.0
        %1810 = vmatpush1.msra.mxu0 0.0
        %1811 = vmatprep.subr.mxu0 0.0
        %1812 = vmatpush1.msra.mxu0 0.0
        %1813 = vmatprep.subr.mxu0 0.0
        %1814 = vmatpush1.msra.mxu0 0.0
        %1815 = vmatprep.subr.mxu0 0.0
        %1816 = vmatpush1.msra.mxu0 0.0
        %1817 = vmatprep.subr.mxu0 0.0
        %1818 = vmatpush1.msra.mxu0 0.0
        %1819 = vmatprep.subr.mxu0 0.0
        %1820 = vmatpush1.msra.mxu0 0.0
        %1821 = vmatprep.subr.mxu0 0.0
        %1822 = vmatpush1.msra.mxu0 0.0
        %1823 = vmatprep.subr.mxu0 0.0
        %1824 = vmatpush1.msra.mxu0 0.0
        %1825 = vmatprep.subr.mxu0 0.0
        %1826 = vmatpush1.msra.mxu0 0.0
        %1827 = vmatprep.subr.mxu0 0.0
        %1828 = vmatpush1.msra.mxu0 0.0
        %1829 = vmatprep.subr.mxu0 0.0
        %1830 = vmatpush1.msra.mxu0 0.0
        %1831 = vmatprep.subr.mxu0 0.0
        %1832 = vmatpush1.msra.mxu0 0.0
        %1833 = vmatprep.subr.mxu0 0.0
        %1834 = vmatpush1.msra.mxu0 0.0
        %1835 = vmatprep.subr.mxu0 0.0
        %1836 = vmatpush1.msra.mxu0 0.0
        %1837 = vmatprep.subr.mxu0 0.0
        %1838 = vmatpush1.msra.mxu0 0.0
        %1839 = vmatprep.subr.mxu0 0.0
        %1840 = vmatpush1.msra.mxu0 0.0
        %1841 = vmatprep.subr.mxu0 0.0
        %1842 = vmatpush1.msra.mxu0 0.0
        %1843 = vmatprep.subr.mxu0 0.0
        %1844 = vmatpush1.msra.mxu0 0.0
        %1845 = vmatprep.subr.mxu0 0.0
        %1846 = vmatpush1.msra.mxu0 0.0
        %1847 = vmatprep.subr.mxu0 0.0
        %1848 = vmatpush1.msra.mxu0 0.0
        %1849 = vmatprep.subr.mxu0 0.0
        %1850 = vmatpush1.msra.mxu0 0.0
        %1851 = vmatprep.subr.mxu0 0.0
        %1852 = vmatpush1.msra.mxu0 0.0
        %1853 = vmatprep.subr.mxu0 0.0
        %1854 = vmatpush1.msra.mxu0 0.0
        %1855 = vmatprep.subr.mxu0 0.0
        %1856 = vmatpush1.msra.mxu0 0.0
        %1857 = vmatprep.subr.mxu0 0.0
        %1858 = vmatpush1.msra.mxu0 0.0
        %1859 = vmatprep.subr.mxu0 0.0
        %1860 = vmatpush1.msra.mxu0 0.0
        %1861 = vmatprep.subr.mxu0 0.0
        %1862 = vmatpush1.msra.mxu0 0.0
        %1863 = vmatprep.subr.mxu0 0.0
        %1864 = vmatpush1.msra.mxu0 0.0
        %1865 = vmatprep.subr.mxu0 0.0
        %1866 = vmatpush1.msra.mxu0 0.0
        %1867 = vmatprep.mubr.f32.mxu0 0.0
        %1868 = vmatmul.mubr.f32.gmra.mrb[0].mxu0 %v1801
        %v1869 = vpop.f32.mrb[0].mxu0
        %v1870 = vadd.f32 0.0, %v1869
        %v1871 = vpop.f32.mrb[0].mxu0
        %1872 = vdwg.mxu0
        %v1873 = vadd.f32 %v1632, %v1870
        %1874 = vrot.lane.b32.xlu0 %v993, 104
        %v1875 = vpop.permute.xlu0 %1874
        %1876 = vrot.lane.b32.xlu0 %v1074, 104
        %v1877 = vpop.permute.xlu0 %1876
        %v1878 = vsel %vm1162, %v1875, 0
        %v1880 = vsel %vm1162, %v1877, 0
        %1882 = vmatprep.subr.mxu0 0.0
        %1883 = vmatpush1.xpose.msra.mxu0 %v1880
        %1884 = vmatprep.subr.mxu0 0.0
        %1885 = vmatpush1.xpose.msra.mxu0 0.0
        %1886 = vmatprep.subr.mxu0 0.0
        %1887 = vmatpush1.xpose.msra.mxu0 0.0
        %1888 = vmatprep.subr.mxu0 0.0
        %1889 = vmatpush1.xpose.msra.mxu0 0.0
        %1890 = vmatprep.subr.mxu0 0.0
        %1891 = vmatpush1.xpose.msra.mxu0 0.0
        %1892 = vmatprep.subr.mxu0 0.0
        %1893 = vmatpush1.xpose.msra.mxu0 0.0
        %1894 = vmatprep.subr.mxu0 0.0
        %1895 = vmatpush1.xpose.msra.mxu0 0.0
        %1896 = vmatprep.subr.mxu0 0.0
        %1897 = vmatpush1.xpose.msra.mxu0 0.0
        %1898 = vmatprep.subr.mxu0 0.0
        %1899 = vmatpush1.xpose.msra.mxu0 0.0
        %1900 = vmatprep.subr.mxu0 0.0
        %1901 = vmatpush1.xpose.msra.mxu0 0.0
        %1902 = vmatprep.subr.mxu0 0.0
        %1903 = vmatpush1.xpose.msra.mxu0 0.0
        %1904 = vmatprep.subr.mxu0 0.0
        %1905 = vmatpush1.xpose.msra.mxu0 0.0
        %1906 = vmatprep.subr.mxu0 0.0
        %1907 = vmatpush1.xpose.msra.mxu0 0.0
        %1908 = vmatprep.subr.mxu0 0.0
        %1909 = vmatpush1.xpose.msra.mxu0 0.0
        %1910 = vmatprep.subr.mxu0 0.0
        %1911 = vmatpush1.xpose.msra.mxu0 0.0
        %1912 = vmatprep.subr.mxu0 0.0
        %1913 = vmatpush1.xpose.msra.mxu0 0.0
        %1914 = vmatprep.subr.mxu0 0.0
        %1915 = vmatpush1.xpose.msra.mxu0 0.0
        %1916 = vmatprep.subr.mxu0 0.0
        %1917 = vmatpush1.xpose.msra.mxu0 0.0
        %1918 = vmatprep.subr.mxu0 0.0
        %1919 = vmatpush1.xpose.msra.mxu0 0.0
        %1920 = vmatprep.subr.mxu0 0.0
        %1921 = vmatpush1.xpose.msra.mxu0 0.0
        %1922 = vmatprep.subr.mxu0 0.0
        %1923 = vmatpush1.xpose.msra.mxu0 0.0
        %1924 = vmatprep.subr.mxu0 0.0
        %1925 = vmatpush1.xpose.msra.mxu0 0.0
        %1926 = vmatprep.subr.mxu0 0.0
        %1927 = vmatpush1.xpose.msra.mxu0 0.0
        %1928 = vmatprep.subr.mxu0 0.0
        %1929 = vmatpush1.xpose.msra.mxu0 0.0
        %1930 = vmatprep.subr.mxu0 0.0
        %1931 = vmatpush1.xpose.msra.mxu0 0.0
        %1932 = vmatprep.subr.mxu0 0.0
        %1933 = vmatpush1.xpose.msra.mxu0 0.0
        %1934 = vmatprep.subr.mxu0 0.0
        %1935 = vmatpush1.xpose.msra.mxu0 0.0
        %1936 = vmatprep.subr.mxu0 0.0
        %1937 = vmatpush1.xpose.msra.mxu0 0.0
        %1938 = vmatprep.subr.mxu0 0.0
        %1939 = vmatpush1.xpose.msra.mxu0 0.0
        %1940 = vmatprep.subr.mxu0 0.0
        %1941 = vmatpush1.xpose.msra.mxu0 0.0
        %1942 = vmatprep.subr.mxu0 0.0
        %1943 = vmatpush1.xpose.msra.mxu0 0.0
        %1944 = vmatprep.subr.mxu0 0.0
        %1945 = vmatpush1.xpose.msra.mxu0 0.0
        %1946 = vmatprep.mubr.f32.mxu0 0.0
        %1947 = vmatmul.mubr.f32.gmra.mrb[0].mxu0 %v1878
        %v1948 = vpop.f32.mrb[0].mxu0
        %v1949 = vadd.f32 0.0, %v1948
        %v1950 = vpop.f32.mrb[0].mxu0
        %1951 = vdwg.mxu0
        %v1952 = vsel %vm1162, %v1949, -inf
        %1953 = vmax.xlane.f32.xlu0 %v1952
        %v1954 = vpop.xlane.xlu0 %1953
        %v1955 = vsub.f32 %v1949, %v1954
        %v1956 = vmul.f32 %v1955, 1.442695
        %v1957 = vpow.pop %v1956
        %v1958 = vsel %vm1162, %v1957, 0.0
        %1959 = vadd.xlane.f32.xlu0 %v1958
        %v1960 = vpop.xlane.xlu0 %1959
        %v1961 = vrcp.pop %v1960
        %v1962 = vmul.f32 %v1957, %v1961
        %1963 = vrot.lane.b32.xlu0 %v1155, 104
        %v1964 = vpop.permute.xlu0 %1963
        %v1967 = vsel %vm1162, %v1962, 0
        %1969 = vmatprep.subr.mxu0 0.0
        %1970 = vmatpush1.msra.mxu0 %v1964
        %1971 = vmatprep.subr.mxu0 0.0
        %1972 = vmatpush1.msra.mxu0 0.0
        %1973 = vmatprep.subr.mxu0 0.0
        %1974 = vmatpush1.msra.mxu0 0.0
        %1975 = vmatprep.subr.mxu0 0.0
        %1976 = vmatpush1.msra.mxu0 0.0
        %1977 = vmatprep.subr.mxu0 0.0
        %1978 = vmatpush1.msra.mxu0 0.0
        %1979 = vmatprep.subr.mxu0 0.0
        %1980 = vmatpush1.msra.mxu0 0.0
        %1981 = vmatprep.subr.mxu0 0.0
        %1982 = vmatpush1.msra.mxu0 0.0
        %1983 = vmatprep.subr.mxu0 0.0
        %1984 = vmatpush1.msra.mxu0 0.0
        %1985 = vmatprep.subr.mxu0 0.0
        %1986 = vmatpush1.msra.mxu0 0.0
        %1987 = vmatprep.subr.mxu0 0.0
        %1988 = vmatpush1.msra.mxu0 0.0
        %1989 = vmatprep.subr.mxu0 0.0
        %1990 = vmatpush1.msra.mxu0 0.0
        %1991 = vmatprep.subr.mxu0 0.0
        %1992 = vmatpush1.msra.mxu0 0.0
        %1993 = vmatprep.subr.mxu0 0.0
        %1994 = vmatpush1.msra.mxu0 0.0
        %1995 = vmatprep.subr.mxu0 0.0
        %1996 = vmatpush1.msra.mxu0 0.0
        %1997 = vmatprep.subr.mxu0 0.0
        %1998 = vmatpush1.msra.mxu0 0.0
        %1999 = vmatprep.subr.mxu0 0.0
        %2000 = vmatpush1.msra.mxu0 0.0
        %2001 = vmatprep.subr.mxu0 0.0
        %2002 = vmatpush1.msra.mxu0 0.0
        %2003 = vmatprep.subr.mxu0 0.0
        %2004 = vmatpush1.msra.mxu0 0.0
        %2005 = vmatprep.subr.mxu0 0.0
        %2006 = vmatpush1.msra.mxu0 0.0
        %2007 = vmatprep.subr.mxu0 0.0
        %2008 = vmatpush1.msra.mxu0 0.0
        %2009 = vmatprep.subr.mxu0 0.0
        %2010 = vmatpush1.msra.mxu0 0.0
        %2011 = vmatprep.subr.mxu0 0.0
        %2012 = vmatpush1.msra.mxu0 0.0
        %2013 = vmatprep.subr.mxu0 0.0
        %2014 = vmatpush1.msra.mxu0 0.0
        %2015 = vmatprep.subr.mxu0 0.0
        %2016 = vmatpush1.msra.mxu0 0.0
        %2017 = vmatprep.subr.mxu0 0.0
        %2018 = vmatpush1.msra.mxu0 0.0
        %2019 = vmatprep.subr.mxu0 0.0
        %2020 = vmatpush1.msra.mxu0 0.0
        %2021 = vmatprep.subr.mxu0 0.0
        %2022 = vmatpush1.msra.mxu0 0.0
        %2023 = vmatprep.subr.mxu0 0.0
        %2024 = vmatpush1.msra.mxu0 0.0
        %2025 = vmatprep.subr.mxu0 0.0
        %2026 = vmatpush1.msra.mxu0 0.0
        %2027 = vmatprep.subr.mxu0 0.0
        %2028 = vmatpush1.msra.mxu0 0.0
        %2029 = vmatprep.subr.mxu0 0.0
        %2030 = vmatpush1.msra.mxu0 0.0
        %2031 = vmatprep.subr.mxu0 0.0
        %2032 = vmatpush1.msra.mxu0 0.0
        %2033 = vmatprep.mubr.f32.mxu0 0.0
        %2034 = vmatmul.mubr.f32.gmra.mrb[0].mxu0 %v1967
        %v2035 = vpop.f32.mrb[0].mxu0
        %v2036 = vadd.f32 0.0, %v2035
        %v2037 = vpop.f32.mrb[0].mxu0
        %2038 = vdwg.mxu0
        %v2040 = vsel %vm1162, %v2036, 0
        %2042 = vmatprep.subr.mxu0 0.0
        %2043 = vmatpush1.msra.mxu0 %v1161
        %2044 = vmatprep.subr.mxu0 0.0
        %2045 = vmatpush1.msra.mxu0 0.0
        %2046 = vmatprep.subr.mxu0 0.0
        %2047 = vmatpush1.msra.mxu0 0.0
        %2048 = vmatprep.subr.mxu0 0.0
        %2049 = vmatpush1.msra.mxu0 0.0
        %2050 = vmatprep.subr.mxu0 0.0
        %2051 = vmatpush1.msra.mxu0 0.0
        %2052 = vmatprep.subr.mxu0 0.0
        %2053 = vmatpush1.msra.mxu0 0.0
        %2054 = vmatprep.subr.mxu0 0.0
        %2055 = vmatpush1.msra.mxu0 0.0
        %2056 = vmatprep.subr.mxu0 0.0
        %2057 = vmatpush1.msra.mxu0 0.0
        %2058 = vmatprep.subr.mxu0 0.0
        %2059 = vmatpush1.msra.mxu0 0.0
        %2060 = vmatprep.subr.mxu0 0.0
        %2061 = vmatpush1.msra.mxu0 0.0
        %2062 = vmatprep.subr.mxu0 0.0
        %2063 = vmatpush1.msra.mxu0 0.0
        %2064 = vmatprep.subr.mxu0 0.0
        %2065 = vmatpush1.msra.mxu0 0.0
        %2066 = vmatprep.subr.mxu0 0.0
        %2067 = vmatpush1.msra.mxu0 0.0
        %2068 = vmatprep.subr.mxu0 0.0
        %2069 = vmatpush1.msra.mxu0 0.0
        %2070 = vmatprep.subr.mxu0 0.0
        %2071 = vmatpush1.msra.mxu0 0.0
        %2072 = vmatprep.subr.mxu0 0.0
        %2073 = vmatpush1.msra.mxu0 0.0
        %2074 = vmatprep.subr.mxu0 0.0
        %2075 = vmatpush1.msra.mxu0 0.0
        %2076 = vmatprep.subr.mxu0 0.0
        %2077 = vmatpush1.msra.mxu0 0.0
        %2078 = vmatprep.subr.mxu0 0.0
        %2079 = vmatpush1.msra.mxu0 0.0
        %2080 = vmatprep.subr.mxu0 0.0
        %2081 = vmatpush1.msra.mxu0 0.0
        %2082 = vmatprep.subr.mxu0 0.0
        %2083 = vmatpush1.msra.mxu0 0.0
        %2084 = vmatprep.subr.mxu0 0.0
        %2085 = vmatpush1.msra.mxu0 0.0
        %2086 = vmatprep.subr.mxu0 0.0
        %2087 = vmatpush1.msra.mxu0 0.0
        %2088 = vmatprep.subr.mxu0 0.0
        %2089 = vmatpush1.msra.mxu0 0.0
        %2090 = vmatprep.subr.mxu0 0.0
        %2091 = vmatpush1.msra.mxu0 0.0
        %2092 = vmatprep.subr.mxu0 0.0
        %2093 = vmatpush1.msra.mxu0 0.0
        %2094 = vmatprep.subr.mxu0 0.0
        %2095 = vmatpush1.msra.mxu0 0.0
        %2096 = vmatprep.subr.mxu0 0.0
        %2097 = vmatpush1.msra.mxu0 0.0
        %2098 = vmatprep.subr.mxu0 0.0
        %2099 = vmatpush1.msra.mxu0 0.0
        %2100 = vmatprep.subr.mxu0 0.0
        %2101 = vmatpush1.msra.mxu0 0.0
        %2102 = vmatprep.subr.mxu0 0.0
        %2103 = vmatpush1.msra.mxu0 0.0
        %2104 = vmatprep.subr.mxu0 0.0
        %2105 = vmatpush1.msra.mxu0 0.0
        %2106 = vmatprep.mubr.f32.mxu0 0.0
        %2107 = vmatmul.mubr.f32.gmra.mrb[0].mxu0 %v2040
        %v2108 = vpop.f32.mrb[0].mxu0
        %v2109 = vadd.f32 0.0, %v2108
        %v2110 = vpop.f32.mrb[0].mxu0
        %2111 = vdwg.mxu0
        %v2112 = vadd.f32 %v1873, %v2109
        %v2113 = vadd.f32 %v880, %v2112
        %v2114 = vld [vmem:[%s855] sm:$0x1]
        %v2116 = vlaneseq
        %v2117 = vshrl.u32 %v2116, 7
        %v2118 = vsub.s32 0, %v2117
        %v2119 = vrot.slane %v2114, %v2118
        %v2121 = vadd.f32 %v2113, %v2119
        %v2122 = vld [vmem:[%s858] sm:$0x1]
        %v2123 = vld [vmem:[%s861] sm:$0x1]
        %v2124 = vsel %vm883, %v2121, 0.0
        %2125 = vadd.xlane.f32.xlu0 %v2124
        %v2126 = vpop.xlane.xlu0 %2125
        %v2127 = vmul.f32 %v2126, %v887
        %v2128 = vsub.f32 %v2121, %v2127
        %v2129 = vmul.f32 %v2128, %v2128
        %v2130 = vsel %vm883, %v2129, 0.0
        %2131 = vadd.xlane.f32.xlu0 %v2130
        %v2132 = vpop.xlane.xlu0 %2131
        %v2133 = vmul.f32 %v2132, %v887
        %v2134 = vadd.f32 %v2133, 1e-05
        %v2135 = vrsqrt.pop %v2134
        %v2136 = vmul.f32 %v2128, %v2135
        %v2138 = vlaneseq
        %v2139 = vshrl.u32 %v2138, 7
        %v2140 = vsub.s32 0, %v2139
        %v2141 = vrot.slane %v2122, %v2140
        %v2143 = vmul.f32 %v2136, %v2141
        %v2145 = vlaneseq
        %v2146 = vshrl.u32 %v2145, 7
        %v2147 = vsub.s32 0, %v2146
        %v2148 = vrot.slane %v2123, %v2147
        %v2150 = vadd.f32 %v2143, %v2148
        %v2151 = vld [vmem:[%s712] sm:$0xff]
        %v2152 = vld [vmem:[%s712 + $0x8] sm:$0xff]
        %v2153 = vld [vmem:[%s712 + $0x10] sm:$0xff]
        %v2154 = vld [vmem:[%s712 + $0x18] sm:$0xff]
        %v2155 = vld [vmem:[%s864] sm:$0x1]
        %v2157 = vlaneseq
        %v2158 = vshrl.u32 %v2157, 7
        %v2159 = vsub.s32 0, %v2158
        %v2160 = vrot.slane %v2155, %v2159
        %v2163 = vsel %vm883, %v2150, 0
        %2165 = vmatprep.subr.mxu0 0.0
        %2166 = vmatpush1.msra.mxu0 %v2151
        %2167 = vmatprep.subr.mxu0 0.0
        %2168 = vmatpush1.msra.mxu0 %v2152
        %2169 = vmatprep.subr.mxu0 0.0
        %2170 = vmatpush1.msra.mxu0 %v2153
        %2171 = vmatprep.subr.mxu0 0.0
        %2172 = vmatpush1.msra.mxu0 %v2154
        %2173 = vmatprep.subr.mxu0 0.0
        %2174 = vmatpush1.msra.mxu0 0.0
        %2175 = vmatprep.subr.mxu0 0.0
        %2176 = vmatpush1.msra.mxu0 0.0
        %2177 = vmatprep.subr.mxu0 0.0
        %2178 = vmatpush1.msra.mxu0 0.0
        %2179 = vmatprep.subr.mxu0 0.0
        %2180 = vmatpush1.msra.mxu0 0.0
        %2181 = vmatprep.subr.mxu0 0.0
        %2182 = vmatpush1.msra.mxu0 0.0
        %2183 = vmatprep.subr.mxu0 0.0
        %2184 = vmatpush1.msra.mxu0 0.0
        %2185 = vmatprep.subr.mxu0 0.0
        %2186 = vmatpush1.msra.mxu0 0.0
        %2187 = vmatprep.subr.mxu0 0.0
        %2188 = vmatpush1.msra.mxu0 0.0
        %2189 = vmatprep.subr.mxu0 0.0
        %2190 = vmatpush1.msra.mxu0 0.0
        %2191 = vmatprep.subr.mxu0 0.0
        %2192 = vmatpush1.msra.mxu0 0.0
        %2193 = vmatprep.subr.mxu0 0.0
        %2194 = vmatpush1.msra.mxu0 0.0
        %2195 = vmatprep.subr.mxu0 0.0
        %2196 = vmatpush1.msra.mxu0 0.0
        %2197 = vmatprep.subr.mxu0 0.0
        %2198 = vmatpush1.msra.mxu0 0.0
        %2199 = vmatprep.subr.mxu0 0.0
        %2200 = vmatpush1.msra.mxu0 0.0
        %2201 = vmatprep.subr.mxu0 0.0
        %2202 = vmatpush1.msra.mxu0 0.0
        %2203 = vmatprep.subr.mxu0 0.0
        %2204 = vmatpush1.msra.mxu0 0.0
        %2205 = vmatprep.subr.mxu0 0.0
        %2206 = vmatpush1.msra.mxu0 0.0
        %2207 = vmatprep.subr.mxu0 0.0
        %2208 = vmatpush1.msra.mxu0 0.0
        %2209 = vmatprep.subr.mxu0 0.0
        %2210 = vmatpush1.msra.mxu0 0.0
        %2211 = vmatprep.subr.mxu0 0.0
        %2212 = vmatpush1.msra.mxu0 0.0
        %2213 = vmatprep.subr.mxu0 0.0
        %2214 = vmatpush1.msra.mxu0 0.0
        %2215 = vmatprep.subr.mxu0 0.0
        %2216 = vmatpush1.msra.mxu0 0.0
        %2217 = vmatprep.subr.mxu0 0.0
        %2218 = vmatpush1.msra.mxu0 0.0
        %2219 = vmatprep.subr.mxu0 0.0
        %2220 = vmatpush1.msra.mxu0 0.0
        %2221 = vmatprep.subr.mxu0 0.0
        %2222 = vmatpush1.msra.mxu0 0.0
        %2223 = vmatprep.subr.mxu0 0.0
        %2224 = vmatpush1.msra.mxu0 0.0
        %2225 = vmatprep.subr.mxu0 0.0
        %2226 = vmatpush1.msra.mxu0 0.0
        %2227 = vmatprep.subr.mxu0 0.0
        %2228 = vmatpush1.msra.mxu0 0.0
        %2229 = vmatprep.mubr.f32.mxu0 0.0
        %2230 = vmatmul.mubr.f32.gmra.mrb[0].mxu0 %v2163
        %v2231 = vpop.f32.mrb[0].mxu0
        %v2232 = vadd.f32 %v2160, %v2231
        %v2233 = vpop.f32.mrb[0].mxu0
        %2234 = vdwg.mxu0
        %v2235 = vmax.f32 %v2232, 0.0
        %v2236 = vld [vmem:[%s869] sm:$0xff]
        %v2237 = vld [vmem:[%s869 + $0x8] sm:$0xff]
        %v2238 = vld [vmem:[%s869 + $0x10] sm:$0xff]
        %v2239 = vld [vmem:[%s869 + $0x18] sm:$0xff]
        %v2240 = vld [vmem:[%s869 + $0x20] sm:$0xff]
        %v2241 = vld [vmem:[%s869 + $0x28] sm:$0xff]
        %v2242 = vld [vmem:[%s869 + $0x30] sm:$0xff]
        %v2243 = vld [vmem:[%s869 + $0x38] sm:$0xff]
        %v2244 = vld [vmem:[%s872] sm:$0x1]
        %v2246 = vlaneseq
        %v2247 = vshrl.u32 %v2246, 7
        %v2248 = vsub.s32 0, %v2247
        %v2249 = vrot.slane %v2244, %v2248
        %vm2251 = vcmask 523264
        %v2253 = vsel %vm2251, %v2235, 0
        %2255 = vmatprep.subr.mxu0 0.0
        %2256 = vmatpush1.msra.mxu0 %v2236
        %2257 = vmatprep.subr.mxu0 0.0
        %2258 = vmatpush1.msra.mxu0 %v2237
        %2259 = vmatprep.subr.mxu0 0.0
        %2260 = vmatpush1.msra.mxu0 %v2238
        %2261 = vmatprep.subr.mxu0 0.0
        %2262 = vmatpush1.msra.mxu0 %v2239
        %2263 = vmatprep.subr.mxu0 0.0
        %2264 = vmatpush1.msra.mxu0 %v2240
        %2265 = vmatprep.subr.mxu0 0.0
        %2266 = vmatpush1.msra.mxu0 %v2241
        %2267 = vmatprep.subr.mxu0 0.0
        %2268 = vmatpush1.msra.mxu0 %v2242
        %2269 = vmatprep.subr.mxu0 0.0
        %2270 = vmatpush1.msra.mxu0 %v2243
        %2271 = vmatprep.subr.mxu0 0.0
        %2272 = vmatpush1.msra.mxu0 0.0
        %2273 = vmatprep.subr.mxu0 0.0
        %2274 = vmatpush1.msra.mxu0 0.0
        %2275 = vmatprep.subr.mxu0 0.0
        %2276 = vmatpush1.msra.mxu0 0.0
        %2277 = vmatprep.subr.mxu0 0.0
        %2278 = vmatpush1.msra.mxu0 0.0
        %2279 = vmatprep.subr.mxu0 0.0
        %2280 = vmatpush1.msra.mxu0 0.0
        %2281 = vmatprep.subr.mxu0 0.0
        %2282 = vmatpush1.msra.mxu0 0.0
        %2283 = vmatprep.subr.mxu0 0.0
        %2284 = vmatpush1.msra.mxu0 0.0
        %2285 = vmatprep.subr.mxu0 0.0
        %2286 = vmatpush1.msra.mxu0 0.0
        %2287 = vmatprep.subr.mxu0 0.0
        %2288 = vmatpush1.msra.mxu0 0.0
        %2289 = vmatprep.subr.mxu0 0.0
        %2290 = vmatpush1.msra.mxu0 0.0
        %2291 = vmatprep.subr.mxu0 0.0
        %2292 = vmatpush1.msra.mxu0 0.0
        %2293 = vmatprep.subr.mxu0 0.0
        %2294 = vmatpush1.msra.mxu0 0.0
        %2295 = vmatprep.subr.mxu0 0.0
        %2296 = vmatpush1.msra.mxu0 0.0
        %2297 = vmatprep.subr.mxu0 0.0
        %2298 = vmatpush1.msra.mxu0 0.0
        %2299 = vmatprep.subr.mxu0 0.0
        %2300 = vmatpush1.msra.mxu0 0.0
        %2301 = vmatprep.subr.mxu0 0.0
        %2302 = vmatpush1.msra.mxu0 0.0
        %2303 = vmatprep.subr.mxu0 0.0
        %2304 = vmatpush1.msra.mxu0 0.0
        %2305 = vmatprep.subr.mxu0 0.0
        %2306 = vmatpush1.msra.mxu0 0.0
        %2307 = vmatprep.subr.mxu0 0.0
        %2308 = vmatpush1.msra.mxu0 0.0
        %2309 = vmatprep.subr.mxu0 0.0
        %2310 = vmatpush1.msra.mxu0 0.0
        %2311 = vmatprep.subr.mxu0 0.0
        %2312 = vmatpush1.msra.mxu0 0.0
        %2313 = vmatprep.subr.mxu0 0.0
        %2314 = vmatpush1.msra.mxu0 0.0
        %2315 = vmatprep.subr.mxu0 0.0
        %2316 = vmatpush1.msra.mxu0 0.0
        %2317 = vmatprep.subr.mxu0 0.0
        %2318 = vmatpush1.msra.mxu0 0.0
        %2319 = vmatprep.mubr.f32.mxu0 0.0
        %2320 = vmatmul.mubr.f32.gmra.mrb[0].mxu0 %v2253
        %v2321 = vpop.f32.mrb[0].mxu0
        %v2322 = vadd.f32 %v2249, %v2321
        %v2323 = vpop.f32.mrb[0].mxu0
        %2324 = vdwg.mxu0
        %v2325 = vadd.f32 %v2121, %v2322
        %2326 = vst.msk [vmem:[%s822] sm:$0xff] %vm883, %v2325
        %s2327 = sand.u32 %s499, 1
        %s2328 = scalar_lea.sflag [#allocation4], %s2327
        %s2329 = sand.u32 %s499, 1
        %s2330 = smul.addr %s2329, 8
        %s2331 = scalar_lea.vmem [#allocation8], %s2330
        // Predicated region
        $region105: #{tpu_custom_call.1} parent=87 // pred_check
          %p2332 = pneg %p509
        $region106: #{tpu_custom_call.1} parent=87 // pred_check_branch
          %2334 = sbr.rel (%p2332) target = $region108
        $region107: #{tpu_custom_call.1} parent=87 // pred_region
          %s2336 = ssub.s32 128, 128
          %2337 = vsyncadd %s2328, %s2336
          %s2338 = smul.addr %s41, 128
          %s2339 = scalar_lea.hbm %s17, %s2338
          %s2341 = sshll.u32 %s2331, 4
          %s2342 = int_to_ptr.vmem [resolvable:$true] %s2341
          %2344 = dma.vmem_to_hbm [thread:$0]  %s2342, 128, %s2339, %s2328
        $region108: #{tpu_custom_call.1} parent=87 // pred_fallthru
          _
      $region88: #{tpu_custom_call.1} parent=5 // pred_fallthru
        _
      %p2345 = scmp.le.s32.totalorder 2, %s32
      // Predicated region
      $region109: #{tpu_custom_call.1} parent=5 // pred_check
        %p2346 = pneg %p2345
      $region110: #{tpu_custom_call.1} parent=5 // pred_check_branch
        %2348 = sbr.rel (%p2346) target = $region112
      $region111: #{tpu_custom_call.1} parent=5 // pred_region
        %s2349 = ssub.s32 %s32, 2
        // Predicated region
        $region113: #{tpu_custom_call.1} parent=111 // pred_check
          %p2350 = pneg %p515
        $region114: #{tpu_custom_call.1} parent=111 // pred_check_branch
          %2352 = sbr.rel (%p2350) target = $region116
        $region115: #{tpu_custom_call.1} parent=111 // pred_region
          %s2353 = sand.u32 %s500, 1
          %s2354 = scalar_lea.sflag [#allocation4], %s2353
          %s2355 = sand.u32 %s500, 1
          %s2356 = smul.addr %s2355, 8
          %s2357 = scalar_lea.vmem [#allocation8], %s2356
          %2358 = dma.done %s2354, 128
        $region116: #{tpu_custom_call.1} parent=111 // pred_fallthru
          _
      $region112: #{tpu_custom_call.1} parent=5 // pred_fallthru
        _
    $region6: #{tpu_custom_call.1} parent=1 // loop_footer
      %s36 = sadd.s32 1, %s32
    $region7: #{tpu_custom_call.1} parent=1 // loop_footer_branch
      %31 = sbr.rel target = $region3
    $region8: #{tpu_custom_call.1} parent=1 // loop_exit
      _
    %2359 = vsyncpa [#allocation3], 1
    %s2360 = scalar_lea.sflag [#allocation3], 1
    %2361 = vsyncpa %s2360, 1
    %2362 = vsyncpa [#allocation6], 1
    %s2363 = scalar_lea.sflag [#allocation6], 1
    %2364 = vsyncpa %s2363, 1
    %2365 = vsyncpa [#allocation4], 1
    %s2366 = scalar_lea.sflag [#allocation4], 1
    %2367 = vsyncpa %s2366, 1

</llo_original>
